<compile_context>
chip_gen: v6e
topology: v6e:2x2x1
jax: 0.10.0
libtpu: 0.0.40
codegen_flags: <defaults>
</compile_context>

<pallas_src>
import functools

import jax
import jax.numpy as jnp
from jax.experimental import pallas as pl
from jax.experimental.pallas import tpu as pltpu


def _find_repetition(dilations):
    """Smallest period p with >= 2 leading repetitions, maximizing covered len."""
    n = len(dilations)
    best_p, best_r, best_cov = n, 1, 0
    for p in range(1, n // 2 + 1):
        r = 1
        while (r + 1) * p <= n and dilations[r * p:(r + 1) * p] == dilations[:p]:
            r += 1
        if r >= 2 and r * p > best_cov:
            best_p, best_r, best_cov = p, r, r * p
    if best_cov == 0:
        return n, 1
    return best_p, best_r


# ---------------------------------------------------------------------------
# Fused encoder kernel (prenet + 13x2 dilated Conv1dBN layers + postnet)
# ---------------------------------------------------------------------------
@functools.lru_cache(maxsize=None)
def _make_fused_encoder_kernel(T, C, K, dilations, num_conv_blocks,
                               compute_dtype):
    period, reps = _find_repetition(dilations)
    use_loop = reps >= 2
    loop_dils = dilations[:period] if use_loop else ()
    tail_dils = dilations[period * reps:] if use_loop else dilations
    layers_per_rep = period * num_conv_blocks
    tail_base = period * reps * num_conv_blocks if use_loop else 0

    def kernel(x_ref, mask_ref, pre_w_ref, pre_b_ref,
               res_w_ref, res_aux_ref,
               post_w0_ref, post_b0_ref, post_bn_ref,
               post_w1_ref, post_b1_ref, out_ref):
        f32 = jnp.float32
        x = x_ref[0]            # (C, T)  f32, original encoder input
        mask = mask_ref[0]      # (1, T)  f32, 0/1 sequence mask (lane-dense)

        # Boundary (output zero-pad) masks, one per distinct dilation, hoisted
        # out of the layer loops.  PyTorch pads the conv OUTPUT with zeros, so
        # the pad columns must be exactly zero *before* ReLU / BN.
        t_iota = jax.lax.broadcasted_iota(jnp.int32, (1, T), 1)
        pad_masks = {}
        for d in sorted(set(dilations)):
            pad_total = d * (K - 1)
            if pad_total == 0:
                continue
            pad_s = pad_total // 2
            t_out = T - pad_total
            pad_masks[d] = jnp.logical_and(
                t_iota >= pad_s, t_iota < pad_s + t_out).astype(f32)

        def conv_bn_layer(h, li, d):
            # h: (C, T) f32.  dilated conv (VALID) -> zero-pad back to T ->
            # ReLU -> eval-mode BatchNorm.  `li` may be a dynamic layer index.
            pad_total = d * (K - 1)
            pad_s = pad_total // 2
            pad_e = pad_total - pad_s
            cc = h.shape[0]
            hb = h.astype(compute_dtype)               # single cast per layer
            if pad_total:
                hb = jnp.concatenate(
                    [jnp.zeros((cc, pad_s), compute_dtype), hb,
                     jnp.zeros((cc, pad_e), compute_dtype)], axis=1)
            # im2col along channels: rows ordered [tap0 c0..cC-1, tap1 ..., ...]
            cols = [hb[:, tap * d: tap * d + T] for tap in range(K)]
            im2col = jnp.concatenate(cols, axis=0)     # (K*C, T) bf16
            acc = jnp.dot(res_w_ref[li], im2col,       # one 128-deep MXU dot
                          preferred_element_type=f32)  # (C, T) f32
            aux = res_aux_ref[li]                      # (C, 3): bias,scale,shift
            acc = acc + aux[:, 0:1]
            if pad_total:
                acc = acc * pad_masks[d]               # exact zeros in pad cols
            act = jnp.maximum(acc, 0.0)                # ReLU
            return act * aux[:, 1:2] + aux[:, 2:3]     # eval-mode BN

        def res_block(o, li0, d):
            res = o
            h = o
            for l in range(num_conv_blocks):
                h = conv_bn_layer(h, li0 + l, d)
            return (h + res) * mask

        # ---- prenet: Conv1d(C, C, 1) -> ReLU, then * x_mask -----------------
        o = jnp.dot(pre_w_ref[...], x.astype(compute_dtype),
                    preferred_element_type=f32) + pre_b_ref[...]
        o = jnp.maximum(o, 0.0) * mask
        # (ResidualConv1dBNBlock re-applies `* x_mask` on entry; with a 0/1
        #  mask a single application is equivalent, so it is folded here.)

        # ---- residual stack: fori_loop over the repeating dilation pattern --
        if use_loop:
            def rep_body(r, o_c):
                base = r * layers_per_rep
                for p_idx, d in enumerate(loop_dils):
                    o_c = res_block(o_c, base + p_idx * num_conv_blocks, d)
                return o_c
            o = jax.lax.fori_loop(0, reps, rep_body, o)
        for b_idx, d in enumerate(tail_dils):
            o = res_block(o, tail_base + b_idx * num_conv_blocks, d)

        # ---- postnet: Conv1x1 -> ReLU -> BN -> Conv1x1, then * x_mask -------
        p = o + x
        p = jnp.dot(post_w0_ref[...], p.astype(compute_dtype),
                    preferred_element_type=f32) + post_b0_ref[...]
        p = jnp.maximum(p, 0.0)
        p = p * post_bn_ref[:, 0:1] + post_bn_ref[:, 1:2]
        p = jnp.dot(post_w1_ref[...], p.astype(compute_dtype),
                    preferred_element_type=f32) + post_b1_ref[...]
        # Module applies x_mask three times at the end; once is equivalent (0/1).
        p = p * mask
        out_ref[0] = p.astype(out_ref.dtype)  # single lane-dense (C_out,T) store

    return kernel


def encoder_forward(packed, x_nct, mask_n1t, compute_dtype=jnp.bfloat16):
    """Fused encoder forward.  x_nct: (B, C, T), x_mask: (B, 1, T) -> (B, C_out, T)."""
    B, C, T = x_nct.shape
    C_out = packed["post_w1"].shape[0]
    K = packed["kernel_size"]
    dilations = packed["dilations"]
    ncb = packed["num_conv_blocks"]
    L = len(dilations) * ncb

    kernel = _make_fused_encoder_kernel(T, C, K, dilations, ncb, compute_dtype)

    inputs = [x_nct, mask_n1t,
              packed["pre_w"], packed["pre_b"],
              packed["res_w"], packed["res_aux"],
              packed["post_w0"], packed["post_b0"], packed["post_bn"],
              packed["post_w1"], packed["post_b1"]]
    in_specs = [
        pl.BlockSpec((1, C, T), lambda i: (i, 0, 0)),        # x (channels-first)
        pl.BlockSpec((1, 1, T), lambda i: (i, 0, 0)),        # x_mask (lane-dense)
        pl.BlockSpec((C, C), lambda i: (0, 0)),              # prenet w
        pl.BlockSpec((C, 1), lambda i: (0, 0)),              # prenet b
        pl.BlockSpec((L, C, K * C), lambda i: (0, 0, 0)),    # stacked im2col res w
        pl.BlockSpec((L, C, 3), lambda i: (0, 0, 0)),        # stacked res bias/BN
        pl.BlockSpec((C, C), lambda i: (0, 0)),              # postnet w0
        pl.BlockSpec((C, 1), lambda i: (0, 0)),              # postnet b0
        pl.BlockSpec((C, 2), lambda i: (0, 0)),              # postnet BN
        pl.BlockSpec((C_out, C), lambda i: (0, 0)),          # postnet w1
        pl.BlockSpec((C_out, 1), lambda i: (0, 0)),          # postnet b1
    ]

    return pl.pallas_call(
        kernel,
        out_shape=jax.ShapeDtypeStruct((B, C_out, T), jnp.float32),
        grid_spec=pltpu.PrefetchScalarGridSpec(
            num_scalar_prefetch=0,
            grid=(B,),                   # batch stays parallel (feeds v7x 2 TCs)
            in_specs=in_specs,
            out_specs=pl.BlockSpec((1, C_out, T), lambda i: (i, 0, 0)),
        ),
        compiler_params=pltpu.CompilerParams(
            dimension_semantics=("parallel",),
            # Explicit VMEM budget: above v5e's 16 MiB scoped default, within
            # v7x's 64 MiB physical.  Resident weights here are ~0.3 MiB bf16;
            # stream res_w per residual block if production C >= 384 on v7x.
            vmem_limit_bytes=32 * 1024 * 1024),
    )(*inputs)


# ---------------------------------------------------------------------------
# Pure-JAX reference of the same math (for correctness checking only)
# ---------------------------------------------------------------------------
def encoder_forward_ref(params, x_nct, mask_n1t, compute_dtype=jnp.bfloat16):
    f32 = jnp.float32

    def conv1d(h, w, b, dilation):          # h: (B, Cin, T), w: (Cout, Cin, K)
        kk = w.shape[2]
        tt = h.shape[2]
        pad_total = dilation * (kk - 1)
        pad_s = pad_total // 2
        pad_e = pad_total - pad_s
        t_out = tt - pad_total
        acc = jnp.zeros((h.shape[0], w.shape[0], t_out), f32)
        for tap in range(kk):
            lo = tap * dilation
            acc = acc + jnp.einsum(
                "oi,bit->bot",
                w[:, :, tap].astype(compute_dtype),
                h[:, :, lo:lo + t_out].astype(compute_dtype),
                preferred_element_type=f32)
        acc = acc + b[None, :, None]
        if pad_total:
            acc = jnp.pad(acc, ((0, 0), (0, 0), (pad_s, pad_e)))
        return acc

    x = x_nct
    mask = mask_n1t
    o = conv1d(x, params["pre_w"], params["pre_b"], 1)
    o = jnp.maximum(o, 0.0) * mask
    o = o * mask                                   # ResidualConv1dBNBlock entry
    for blk in params["res_blocks"]:
        res = o
        h = o
        for layer in blk["layers"]:
            h = conv1d(h, layer["w"], layer["b"], blk["dilation"])
            h = jnp.maximum(h, 0.0)
            h = h * layer["bn"][0][None, :, None] + layer["bn"][1][None, :, None]
        o = (h + res) * mask
    p = o + x
    p = conv1d(p, params["post_w0"], params["post_b0"], 1)
    p = jnp.maximum(p, 0.0)
    p = (p * params["post_bn"][0][None, :, None]
         + params["post_bn"][1][None, :, None])
    p = conv1d(p, params["post_w1"], params["post_b1"], 1)
    p = p * mask                                   # postnet(...) * x_mask
    p = p * mask                                   # return o * x_mask (encoder)
    p = p * mask                                   # return o * x_mask (Encoder)
    return p


# ---------------------------------------------------------------------------
# Deterministic synthetic parameters (shapes match the PyTorch module)
# ---------------------------------------------------------------------------
def init_encoder_params(key, C, C_out, kernel_size, dilations,
                        num_conv_blocks=2, w_scale=0.1):
    keys = iter(jax.random.split(key, 512))

    def conv(cin, cout, k):                 # PyTorch-native (Cout, Cin, K)
        w = jax.random.normal(next(keys), (cout, cin, k), jnp.float32) * w_scale
        b = jax.random.normal(next(keys), (cout,), jnp.float32) * w_scale
        return w, b

    def bn(c):                              # eval-mode folded (scale, shift)
        gamma = 1.0 + 0.1 * jax.random.normal(next(keys), (c,), jnp.float32)
        beta = 0.1 * jax.random.normal(next(keys), (c,), jnp.float32)
        rmean = 0.1 * jax.random.normal(next(keys), (c,), jnp.float32)
        rvar = jax.random.uniform(next(keys), (c,), jnp.float32, 0.5, 1.5)
        eps = 1e-5
        scale = gamma / jnp.sqrt(rvar + eps)
        shift = beta - rmean * scale
        return jnp.stack([scale, shift], axis=0)    # (2, C)

    params = {}
    params["pre_w"], params["pre_b"] = conv(C, C, 1)
    blocks = []
    for d in dilations:
        layers = []
        for _ in range(num_conv_blocks):
            w, b = conv(C, C, kernel_size)
            layers.append({"w": w, "b": b, "bn": bn(C)})
        blocks.append({"dilation": int(d), "layers": layers})
    params["res_blocks"] = blocks
    params["post_w0"], params["post_b0"] = conv(C, C, 1)
    params["post_bn"] = bn(C)
    params["post_w1"], params["post_b1"] = conv(C, C_out, 1)
    return params


def pack_params(params, compute_dtype=jnp.bfloat16):
    """Stack all per-layer weights into the fused-kernel resident arrays."""
    layers = [layer for blk in params["res_blocks"] for layer in blk["layers"]]
    K = layers[0]["w"].shape[2]

    def im2col_w(w):                        # (Cout, Cin, K) -> (Cout, K*Cin)
        cout, cin, k = w.shape
        return jnp.transpose(w, (0, 2, 1)).reshape(cout, k * cin)

    res_w = jnp.stack([im2col_w(l["w"]) for l in layers], axis=0)     # (L,C,K*C)
    res_aux = jnp.stack(
        [jnp.stack([l["b"], l["bn"][0], l["bn"][1]], axis=-1) for l in layers],
        axis=0)                                                       # (L,C,3)
    return {
        "pre_w": params["pre_w"][:, :, 0].astype(compute_dtype),      # (C, C)
        "pre_b": params["pre_b"][:, None],                            # (C, 1)
        "res_w": res_w.astype(compute_dtype),
        "res_aux": res_aux,
        "post_w0": params["post_w0"][:, :, 0].astype(compute_dtype),
        "post_b0": params["post_b0"][:, None],
        "post_bn": jnp.stack([params["post_bn"][0], params["post_bn"][1]],
                             axis=-1),                                # (C, 2)
        "post_w1": params["post_w1"][:, :, 0].astype(compute_dtype),  # (C_out,C)
        "post_b1": params["post_b1"][:, None],                        # (C_out,1)
        "kernel_size": int(K),
        "dilations": tuple(int(b["dilation"]) for b in params["res_blocks"]),
        "num_conv_blocks": len(params["res_blocks"][0]["layers"]),
    }


if __name__ == "__main__":
    B, C, C_OUT, T = 2, 32, 16, 32
    kernel_size = 4
    dilations = 4 * [1, 2, 4] + [1]       # default residual_conv_bn (13 blocks)
    num_conv_blocks = 2

    key = jax.random.PRNGKey(0)
    kx, kp = jax.random.split(key)
    x = jax.random.normal(kx, (B, C, T), jnp.float32)                 # [B, C, T]
    lengths = jnp.array([T, 24])
    x_mask = (jnp.arange(T)[None, None, :] < lengths[:, None, None]
              ).astype(jnp.float32)                                   # [B, 1, T]

    params = init_encoder_params(kp, C, C_OUT, kernel_size, dilations,
                                 num_conv_blocks=num_conv_blocks)
    packed = pack_params(params)

    run_pallas = jax.jit(lambda xx, mm: encoder_forward(packed, xx, mm))
    out = jax.block_until_ready(run_pallas(x, x_mask))

    run_ref = jax.jit(lambda xx, mm: encoder_forward_ref(params, xx, mm))
    ref = jax.block_until_ready(run_ref(x, x_mask))

    assert out.shape == (B, C_OUT, T), out.shape
    max_err = float(jnp.max(jnp.abs(out - ref)))
    if not bool(jnp.all(jnp.isfinite(out))) or max_err > 1e-2:
        raise AssertionError(f"Pallas output mismatch, max abs err = {max_err}")
    print("KERNEL_OK")
</pallas_src>

<mosaic_0001>
module attributes {stable_mosaic.version = 11 : i64} {
  func.func @kernel(%arg0: i32, %arg1: memref<1x32x32xf32, #tpu.memory_space<vmem>>, %arg2: memref<1x1x32xf32, #tpu.memory_space<vmem>>, %arg3: memref<32x32xbf16, #tpu.memory_space<vmem>>, %arg4: memref<32x1xf32, #tpu.memory_space<vmem>>, %arg5: memref<26x32x128xbf16, #tpu.memory_space<vmem>>, %arg6: memref<26x32x3xf32, #tpu.memory_space<vmem>>, %arg7: memref<32x32xbf16, #tpu.memory_space<vmem>>, %arg8: memref<32x1xf32, #tpu.memory_space<vmem>>, %arg9: memref<32x2xf32, #tpu.memory_space<vmem>>, %arg10: memref<16x32xbf16, #tpu.memory_space<vmem>>, %arg11: memref<16x1xf32, #tpu.memory_space<vmem>>, %arg12: memref<1x16x32xf32, #tpu.memory_space<vmem>>) attributes {dimension_semantics = [#tpu.dimension_semantics<parallel>], iteration_bounds = array<i64: 2>, scalar_prefetch = 0 : i64, scratch_operands = 0 : i64, tpu.core_type = #tpu.core_type<tc>, window_params = [{transform_indices = @transform_0, window_bounds = array<i64: 1, 32, 32>}, {transform_indices = @transform_1, window_bounds = array<i64: 1, 1, 32>}, {pipeline_mode = #tpu.pipeline_mode<synchronous>, transform_indices = @transform_2, window_bounds = array<i64: 32, 32>}, {pipeline_mode = #tpu.pipeline_mode<synchronous>, transform_indices = @transform_3, window_bounds = array<i64: 32, 1>}, {pipeline_mode = #tpu.pipeline_mode<synchronous>, transform_indices = @transform_4, window_bounds = array<i64: 26, 32, 128>}, {pipeline_mode = #tpu.pipeline_mode<synchronous>, transform_indices = @transform_5, window_bounds = array<i64: 26, 32, 3>}, {pipeline_mode = #tpu.pipeline_mode<synchronous>, transform_indices = @transform_6, window_bounds = array<i64: 32, 32>}, {pipeline_mode = #tpu.pipeline_mode<synchronous>, transform_indices = @transform_7, window_bounds = array<i64: 32, 1>}, {pipeline_mode = #tpu.pipeline_mode<synchronous>, transform_indices = @transform_8, window_bounds = array<i64: 32, 2>}, {pipeline_mode = #tpu.pipeline_mode<synchronous>, transform_indices = @transform_9, window_bounds = array<i64: 16, 32>}, {pipeline_mode = #tpu.pipeline_mode<synchronous>, transform_indices = @transform_10, window_bounds = array<i64: 16, 1>}, {transform_indices = @transform_11, window_bounds = array<i64: 1, 16, 32>}]} {
    %c0 = arith.constant 0 : index
    %c0_0 = arith.constant 0 : index
    %c0_1 = arith.constant 0 : index
    %0 = vector.load %arg1[%c0, %c0_0, %c0_1] : memref<1x32x32xf32, #tpu.memory_space<vmem>>, vector<1x32x32xf32>
    %1 = vector.shape_cast %0 : vector<1x32x32xf32> to vector<32x32xf32>
    %c0_2 = arith.constant 0 : index
    %c0_3 = arith.constant 0 : index
    %c0_4 = arith.constant 0 : index
    %2 = vector.load %arg2[%c0_2, %c0_3, %c0_4] : memref<1x1x32xf32, #tpu.memory_space<vmem>>, vector<1x1x32xf32>
    %3 = vector.shape_cast %2 : vector<1x1x32xf32> to vector<1x32xf32>
    %4 = tpu.iota {dimensions = array<i32: 1>} : vector<1x32xi32>
    %c1_i32 = arith.constant 1 : i32
    %5 = vector.broadcast %c1_i32 : i32 to vector<1x32xi32>
    %6 = arith.cmpi sge, %4, %5 : vector<1x32xi32>
    %c30_i32 = arith.constant 30 : i32
    %7 = vector.broadcast %c30_i32 : i32 to vector<1x32xi32>
    %8 = arith.cmpi slt, %4, %7 : vector<1x32xi32>
    %9 = arith.andi %6, %8 : vector<1x32xi1>
    %10 = arith.extui %9 : vector<1x32xi1> to vector<1x32xi32>
    %11 = arith.sitofp %10 : vector<1x32xi32> to vector<1x32xf32>
    %c3_i32 = arith.constant 3 : i32
    %12 = vector.broadcast %c3_i32 : i32 to vector<1x32xi32>
    %13 = arith.cmpi sge, %4, %12 : vector<1x32xi32>
    %c29_i32 = arith.constant 29 : i32
    %14 = vector.broadcast %c29_i32 : i32 to vector<1x32xi32>
    %15 = arith.cmpi slt, %4, %14 : vector<1x32xi32>
    %16 = arith.andi %13, %15 : vector<1x32xi1>
    %17 = arith.extui %16 : vector<1x32xi1> to vector<1x32xi32>
    %18 = arith.sitofp %17 : vector<1x32xi32> to vector<1x32xf32>
    %c6_i32 = arith.constant 6 : i32
    %19 = vector.broadcast %c6_i32 : i32 to vector<1x32xi32>
    %20 = arith.cmpi sge, %4, %19 : vector<1x32xi32>
    %c26_i32 = arith.constant 26 : i32
    %21 = vector.broadcast %c26_i32 : i32 to vector<1x32xi32>
    %22 = arith.cmpi slt, %4, %21 : vector<1x32xi32>
    %23 = arith.andi %20, %22 : vector<1x32xi1>
    %24 = arith.extui %23 : vector<1x32xi1> to vector<1x32xi32>
    %25 = arith.sitofp %24 : vector<1x32xi32> to vector<1x32xf32>
    %c0_5 = arith.constant 0 : index
    %c0_6 = arith.constant 0 : index
    %26 = vector.load %arg3[%c0_5, %c0_6] : memref<32x32xbf16, #tpu.memory_space<vmem>>, vector<32x32xbf16>
    %27 = arith.truncf %1 : vector<32x32xf32> to vector<32x32xbf16>
    %cst = arith.constant dense<0.000000e+00> : vector<32x32xf32>
    %28 = tpu.matmul %26, %27, %cst {dimension_numbers = #tpu.dot_dimension_numbers<[1], [0], [0], [1], [0, 0, 1, 1], [], []>} : vector<32x32xbf16>, vector<32x32xbf16>, vector<32x32xf32> -> vector<32x32xf32>
    %c0_7 = arith.constant 0 : index
    %c0_8 = arith.constant 0 : index
    %29 = vector.load %arg4[%c0_7, %c0_8] : memref<32x1xf32, #tpu.memory_space<vmem>>, vector<32x1xf32>
    %30 = vector.broadcast %29 : vector<32x1xf32> to vector<32x32xf32>
    %31 = arith.addf %28, %30 : vector<32x32xf32>
    %cst_9 = arith.constant 0.000000e+00 : f32
    %32 = vector.broadcast %cst_9 : f32 to vector<32x32xf32>
    %33 = arith.maximumf %31, %32 : vector<32x32xf32>
    %34 = vector.broadcast %3 : vector<1x32xf32> to vector<32x32xf32>
    %35 = arith.mulf %33, %34 : vector<32x32xf32>
    %c0_i32 = arith.constant 0 : i32
    %c4_i32 = arith.constant 4 : i32
    %36 = arith.addi %c0_i32, %c4_i32 : i32
    %c1_i32_10 = arith.constant 1 : i32
    %37 = scf.for %arg13 = %c0_i32 to %36 step %c1_i32_10 iter_args(%arg14 = %35) -> (vector<32x32xf32>)  : i32 {
      %c6_i32_47 = arith.constant 6 : i32
      %121 = arith.muli %arg13, %c6_i32_47 : i32
      %c0_i32_48 = arith.constant 0 : i32
      %122 = arith.addi %121, %c0_i32_48 : i32
      %c0_i32_49 = arith.constant 0 : i32
      %123 = arith.addi %122, %c0_i32_49 : i32
      %124 = arith.truncf %arg14 : vector<32x32xf32> to vector<32x32xbf16>
      %cst_50 = arith.constant 0.000000e+00 : bf16
      %125 = vector.broadcast %cst_50 : bf16 to vector<32x1xbf16>
      %cst_51 = arith.constant 0.000000e+00 : bf16
      %126 = vector.broadcast %cst_51 : bf16 to vector<32x2xbf16>
      %127 = tpu.concatenate %125, %124, %126 in 1 : vector<32x1xbf16>, vector<32x32xbf16>, vector<32x2xbf16> -> vector<32x35xbf16>
      %128 = vector.extract_strided_slice %127 {offsets = [0, 0], sizes = [32, 32], strides = [1, 1]} : vector<32x35xbf16> to vector<32x32xbf16>
      %129 = vector.extract_strided_slice %127 {offsets = [0, 1], sizes = [32, 32], strides = [1, 1]} : vector<32x35xbf16> to vector<32x32xbf16>
      %130 = vector.extract_strided_slice %127 {offsets = [0, 2], sizes = [32, 32], strides = [1, 1]} : vector<32x35xbf16> to vector<32x32xbf16>
      %131 = vector.extract_strided_slice %127 {offsets = [0, 3], sizes = [32, 32], strides = [1, 1]} : vector<32x35xbf16> to vector<32x32xbf16>
      %132 = tpu.concatenate %128, %129, %130, %131 in 0 : vector<32x32xbf16>, vector<32x32xbf16>, vector<32x32xbf16>, vector<32x32xbf16> -> vector<128x32xbf16>
      %133 = arith.index_cast %123 : i32 to index
      %c0_52 = arith.constant 0 : index
      %c0_53 = arith.constant 0 : index
      %134 = vector.load %arg5[%133, %c0_52, %c0_53] : memref<26x32x128xbf16, #tpu.memory_space<vmem>>, vector<1x32x128xbf16>
      %135 = vector.shape_cast %134 : vector<1x32x128xbf16> to vector<32x128xbf16>
      %cst_54 = arith.constant dense<0.000000e+00> : vector<32x32xf32>
      %136 = tpu.matmul %135, %132, %cst_54 {dimension_numbers = #tpu.dot_dimension_numbers<[1], [0], [0], [1], [0, 0, 1, 1], [], []>} : vector<32x128xbf16>, vector<128x32xbf16>, vector<32x32xf32> -> vector<32x32xf32>
      %137 = arith.index_cast %123 : i32 to index
      %c0_55 = arith.constant 0 : index
      %c0_56 = arith.constant 0 : index
      %138 = vector.load %arg6[%137, %c0_55, %c0_56] : memref<26x32x3xf32, #tpu.memory_space<vmem>>, vector<1x32x3xf32>
      %139 = vector.shape_cast %138 : vector<1x32x3xf32> to vector<32x3xf32>
      %140 = vector.extract_strided_slice %139 {offsets = [0, 0], sizes = [32, 1], strides = [1, 1]} : vector<32x3xf32> to vector<32x1xf32>
      %141 = vector.broadcast %140 : vector<32x1xf32> to vector<32x32xf32>
      %142 = arith.addf %136, %141 : vector<32x32xf32>
      %143 = vector.broadcast %11 : vector<1x32xf32> to vector<32x32xf32>
      %144 = arith.mulf %142, %143 : vector<32x32xf32>
      %cst_57 = arith.constant 0.000000e+00 : f32
      %145 = vector.broadcast %cst_57 : f32 to vector<32x32xf32>
      %146 = arith.maximumf %144, %145 : vector<32x32xf32>
      %147 = vector.extract_strided_slice %139 {offsets = [0, 1], sizes = [32, 1], strides = [1, 1]} : vector<32x3xf32> to vector<32x1xf32>
      %148 = vector.broadcast %147 : vector<32x1xf32> to vector<32x32xf32>
      %149 = arith.mulf %146, %148 : vector<32x32xf32>
      %150 = vector.extract_strided_slice %139 {offsets = [0, 2], sizes = [32, 1], strides = [1, 1]} : vector<32x3xf32> to vector<32x1xf32>
      %151 = vector.broadcast %150 : vector<32x1xf32> to vector<32x32xf32>
      %152 = arith.addf %149, %151 : vector<32x32xf32>
      %c1_i32_58 = arith.constant 1 : i32
      %153 = arith.addi %122, %c1_i32_58 : i32
      %154 = arith.truncf %152 : vector<32x32xf32> to vector<32x32xbf16>
      %cst_59 = arith.constant 0.000000e+00 : bf16
      %155 = vector.broadcast %cst_59 : bf16 to vector<32x1xbf16>
      %cst_60 = arith.constant 0.000000e+00 : bf16
      %156 = vector.broadcast %cst_60 : bf16 to vector<32x2xbf16>
      %157 = tpu.concatenate %155, %154, %156 in 1 : vector<32x1xbf16>, vector<32x32xbf16>, vector<32x2xbf16> -> vector<32x35xbf16>
      %158 = vector.extract_strided_slice %157 {offsets = [0, 0], sizes = [32, 32], strides = [1, 1]} : vector<32x35xbf16> to vector<32x32xbf16>
      %159 = vector.extract_strided_slice %157 {offsets = [0, 1], sizes = [32, 32], strides = [1, 1]} : vector<32x35xbf16> to vector<32x32xbf16>
      %160 = vector.extract_strided_slice %157 {offsets = [0, 2], sizes = [32, 32], strides = [1, 1]} : vector<32x35xbf16> to vector<32x32xbf16>
      %161 = vector.extract_strided_slice %157 {offsets = [0, 3], sizes = [32, 32], strides = [1, 1]} : vector<32x35xbf16> to vector<32x32xbf16>
      %162 = tpu.concatenate %158, %159, %160, %161 in 0 : vector<32x32xbf16>, vector<32x32xbf16>, vector<32x32xbf16>, vector<32x32xbf16> -> vector<128x32xbf16>
      %163 = arith.index_cast %153 : i32 to index
      %c0_61 = arith.constant 0 : index
      %c0_62 = arith.constant 0 : index
      %164 = vector.load %arg5[%163, %c0_61, %c0_62] : memref<26x32x128xbf16, #tpu.memory_space<vmem>>, vector<1x32x128xbf16>
      %165 = vector.shape_cast %164 : vector<1x32x128xbf16> to vector<32x128xbf16>
      %cst_63 = arith.constant dense<0.000000e+00> : vector<32x32xf32>
      %166 = tpu.matmul %165, %162, %cst_63 {dimension_numbers = #tpu.dot_dimension_numbers<[1], [0], [0], [1], [0, 0, 1, 1], [], []>} : vector<32x128xbf16>, vector<128x32xbf16>, vector<32x32xf32> -> vector<32x32xf32>
      %167 = arith.index_cast %153 : i32 to index
      %c0_64 = arith.constant 0 : index
      %c0_65 = arith.constant 0 : index
      %168 = vector.load %arg6[%167, %c0_64, %c0_65] : memref<26x32x3xf32, #tpu.memory_space<vmem>>, vector<1x32x3xf32>
      %169 = vector.shape_cast %168 : vector<1x32x3xf32> to vector<32x3xf32>
      %170 = vector.extract_strided_slice %169 {offsets = [0, 0], sizes = [32, 1], strides = [1, 1]} : vector<32x3xf32> to vector<32x1xf32>
      %171 = vector.broadcast %170 : vector<32x1xf32> to vector<32x32xf32>
      %172 = arith.addf %166, %171 : vector<32x32xf32>
      %173 = vector.broadcast %11 : vector<1x32xf32> to vector<32x32xf32>
      %174 = arith.mulf %172, %173 : vector<32x32xf32>
      %cst_66 = arith.constant 0.000000e+00 : f32
      %175 = vector.broadcast %cst_66 : f32 to vector<32x32xf32>
      %176 = arith.maximumf %174, %175 : vector<32x32xf32>
      %177 = vector.extract_strided_slice %169 {offsets = [0, 1], sizes = [32, 1], strides = [1, 1]} : vector<32x3xf32> to vector<32x1xf32>
      %178 = vector.broadcast %177 : vector<32x1xf32> to vector<32x32xf32>
      %179 = arith.mulf %176, %178 : vector<32x32xf32>
      %180 = vector.extract_strided_slice %169 {offsets = [0, 2], sizes = [32, 1], strides = [1, 1]} : vector<32x3xf32> to vector<32x1xf32>
      %181 = vector.broadcast %180 : vector<32x1xf32> to vector<32x32xf32>
      %182 = arith.addf %179, %181 : vector<32x32xf32>
      %183 = arith.addf %182, %arg14 : vector<32x32xf32>
      %184 = vector.broadcast %3 : vector<1x32xf32> to vector<32x32xf32>
      %185 = arith.mulf %183, %184 : vector<32x32xf32>
      %c2_i32 = arith.constant 2 : i32
      %186 = arith.addi %121, %c2_i32 : i32
      %c0_i32_67 = arith.constant 0 : i32
      %187 = arith.addi %186, %c0_i32_67 : i32
      %188 = arith.truncf %185 : vector<32x32xf32> to vector<32x32xbf16>
      %cst_68 = arith.constant 0.000000e+00 : bf16
      %189 = vector.broadcast %cst_68 : bf16 to vector<32x3xbf16>
      %cst_69 = arith.constant 0.000000e+00 : bf16
      %190 = vector.broadcast %cst_69 : bf16 to vector<32x3xbf16>
      %191 = tpu.concatenate %189, %188, %190 in 1 : vector<32x3xbf16>, vector<32x32xbf16>, vector<32x3xbf16> -> vector<32x38xbf16>
      %192 = vector.extract_strided_slice %191 {offsets = [0, 0], sizes = [32, 32], strides = [1, 1]} : vector<32x38xbf16> to vector<32x32xbf16>
      %193 = vector.extract_strided_slice %191 {offsets = [0, 2], sizes = [32, 32], strides = [1, 1]} : vector<32x38xbf16> to vector<32x32xbf16>
      %194 = vector.extract_strided_slice %191 {offsets = [0, 4], sizes = [32, 32], strides = [1, 1]} : vector<32x38xbf16> to vector<32x32xbf16>
      %195 = vector.extract_strided_slice %191 {offsets = [0, 6], sizes = [32, 32], strides = [1, 1]} : vector<32x38xbf16> to vector<32x32xbf16>
      %196 = tpu.concatenate %192, %193, %194, %195 in 0 : vector<32x32xbf16>, vector<32x32xbf16>, vector<32x32xbf16>, vector<32x32xbf16> -> vector<128x32xbf16>
      %197 = arith.index_cast %187 : i32 to index
      %c0_70 = arith.constant 0 : index
      %c0_71 = arith.constant 0 : index
      %198 = vector.load %arg5[%197, %c0_70, %c0_71] : memref<26x32x128xbf16, #tpu.memory_space<vmem>>, vector<1x32x128xbf16>
      %199 = vector.shape_cast %198 : vector<1x32x128xbf16> to vector<32x128xbf16>
      %cst_72 = arith.constant dense<0.000000e+00> : vector<32x32xf32>
      %200 = tpu.matmul %199, %196, %cst_72 {dimension_numbers = #tpu.dot_dimension_numbers<[1], [0], [0], [1], [0, 0, 1, 1], [], []>} : vector<32x128xbf16>, vector<128x32xbf16>, vector<32x32xf32> -> vector<32x32xf32>
      %201 = arith.index_cast %187 : i32 to index
      %c0_73 = arith.constant 0 : index
      %c0_74 = arith.constant 0 : index
      %202 = vector.load %arg6[%201, %c0_73, %c0_74] : memref<26x32x3xf32, #tpu.memory_space<vmem>>, vector<1x32x3xf32>
      %203 = vector.shape_cast %202 : vector<1x32x3xf32> to vector<32x3xf32>
      %204 = vector.extract_strided_slice %203 {offsets = [0, 0], sizes = [32, 1], strides = [1, 1]} : vector<32x3xf32> to vector<32x1xf32>
      %205 = vector.broadcast %204 : vector<32x1xf32> to vector<32x32xf32>
      %206 = arith.addf %200, %205 : vector<32x32xf32>
      %207 = vector.broadcast %18 : vector<1x32xf32> to vector<32x32xf32>
      %208 = arith.mulf %206, %207 : vector<32x32xf32>
      %cst_75 = arith.constant 0.000000e+00 : f32
      %209 = vector.broadcast %cst_75 : f32 to vector<32x32xf32>
      %210 = arith.maximumf %208, %209 : vector<32x32xf32>
      %211 = vector.extract_strided_slice %203 {offsets = [0, 1], sizes = [32, 1], strides = [1, 1]} : vector<32x3xf32> to vector<32x1xf32>
      %212 = vector.broadcast %211 : vector<32x1xf32> to vector<32x32xf32>
      %213 = arith.mulf %210, %212 : vector<32x32xf32>
      %214 = vector.extract_strided_slice %203 {offsets = [0, 2], sizes = [32, 1], strides = [1, 1]} : vector<32x3xf32> to vector<32x1xf32>
      %215 = vector.broadcast %214 : vector<32x1xf32> to vector<32x32xf32>
      %216 = arith.addf %213, %215 : vector<32x32xf32>
      %c1_i32_76 = arith.constant 1 : i32
      %217 = arith.addi %186, %c1_i32_76 : i32
      %218 = arith.truncf %216 : vector<32x32xf32> to vector<32x32xbf16>
      %cst_77 = arith.constant 0.000000e+00 : bf16
      %219 = vector.broadcast %cst_77 : bf16 to vector<32x3xbf16>
      %cst_78 = arith.constant 0.000000e+00 : bf16
      %220 = vector.broadcast %cst_78 : bf16 to vector<32x3xbf16>
      %221 = tpu.concatenate %219, %218, %220 in 1 : vector<32x3xbf16>, vector<32x32xbf16>, vector<32x3xbf16> -> vector<32x38xbf16>
      %222 = vector.extract_strided_slice %221 {offsets = [0, 0], sizes = [32, 32], strides = [1, 1]} : vector<32x38xbf16> to vector<32x32xbf16>
      %223 = vector.extract_strided_slice %221 {offsets = [0, 2], sizes = [32, 32], strides = [1, 1]} : vector<32x38xbf16> to vector<32x32xbf16>
      %224 = vector.extract_strided_slice %221 {offsets = [0, 4], sizes = [32, 32], strides = [1, 1]} : vector<32x38xbf16> to vector<32x32xbf16>
      %225 = vector.extract_strided_slice %221 {offsets = [0, 6], sizes = [32, 32], strides = [1, 1]} : vector<32x38xbf16> to vector<32x32xbf16>
      %226 = tpu.concatenate %222, %223, %224, %225 in 0 : vector<32x32xbf16>, vector<32x32xbf16>, vector<32x32xbf16>, vector<32x32xbf16> -> vector<128x32xbf16>
      %227 = arith.index_cast %217 : i32 to index
      %c0_79 = arith.constant 0 : index
      %c0_80 = arith.constant 0 : index
      %228 = vector.load %arg5[%227, %c0_79, %c0_80] : memref<26x32x128xbf16, #tpu.memory_space<vmem>>, vector<1x32x128xbf16>
      %229 = vector.shape_cast %228 : vector<1x32x128xbf16> to vector<32x128xbf16>
      %cst_81 = arith.constant dense<0.000000e+00> : vector<32x32xf32>
      %230 = tpu.matmul %229, %226, %cst_81 {dimension_numbers = #tpu.dot_dimension_numbers<[1], [0], [0], [1], [0, 0, 1, 1], [], []>} : vector<32x128xbf16>, vector<128x32xbf16>, vector<32x32xf32> -> vector<32x32xf32>
      %231 = arith.index_cast %217 : i32 to index
      %c0_82 = arith.constant 0 : index
      %c0_83 = arith.constant 0 : index
      %232 = vector.load %arg6[%231, %c0_82, %c0_83] : memref<26x32x3xf32, #tpu.memory_space<vmem>>, vector<1x32x3xf32>
      %233 = vector.shape_cast %232 : vector<1x32x3xf32> to vector<32x3xf32>
      %234 = vector.extract_strided_slice %233 {offsets = [0, 0], sizes = [32, 1], strides = [1, 1]} : vector<32x3xf32> to vector<32x1xf32>
      %235 = vector.broadcast %234 : vector<32x1xf32> to vector<32x32xf32>
      %236 = arith.addf %230, %235 : vector<32x32xf32>
      %237 = vector.broadcast %18 : vector<1x32xf32> to vector<32x32xf32>
      %238 = arith.mulf %236, %237 : vector<32x32xf32>
      %cst_84 = arith.constant 0.000000e+00 : f32
      %239 = vector.broadcast %cst_84 : f32 to vector<32x32xf32>
      %240 = arith.maximumf %238, %239 : vector<32x32xf32>
      %241 = vector.extract_strided_slice %233 {offsets = [0, 1], sizes = [32, 1], strides = [1, 1]} : vector<32x3xf32> to vector<32x1xf32>
      %242 = vector.broadcast %241 : vector<32x1xf32> to vector<32x32xf32>
      %243 = arith.mulf %240, %242 : vector<32x32xf32>
      %244 = vector.extract_strided_slice %233 {offsets = [0, 2], sizes = [32, 1], strides = [1, 1]} : vector<32x3xf32> to vector<32x1xf32>
      %245 = vector.broadcast %244 : vector<32x1xf32> to vector<32x32xf32>
      %246 = arith.addf %243, %245 : vector<32x32xf32>
      %247 = arith.addf %246, %185 : vector<32x32xf32>
      %248 = vector.broadcast %3 : vector<1x32xf32> to vector<32x32xf32>
      %249 = arith.mulf %247, %248 : vector<32x32xf32>
      %c4_i32_85 = arith.constant 4 : i32
      %250 = arith.addi %121, %c4_i32_85 : i32
      %c0_i32_86 = arith.constant 0 : i32
      %251 = arith.addi %250, %c0_i32_86 : i32
      %252 = arith.truncf %249 : vector<32x32xf32> to vector<32x32xbf16>
      %cst_87 = arith.constant 0.000000e+00 : bf16
      %253 = vector.broadcast %cst_87 : bf16 to vector<32x6xbf16>
      %cst_88 = arith.constant 0.000000e+00 : bf16
      %254 = vector.broadcast %cst_88 : bf16 to vector<32x6xbf16>
      %255 = tpu.concatenate %253, %252, %254 in 1 : vector<32x6xbf16>, vector<32x32xbf16>, vector<32x6xbf16> -> vector<32x44xbf16>
      %256 = vector.extract_strided_slice %255 {offsets = [0, 0], sizes = [32, 32], strides = [1, 1]} : vector<32x44xbf16> to vector<32x32xbf16>
      %257 = vector.extract_strided_slice %255 {offsets = [0, 4], sizes = [32, 32], strides = [1, 1]} : vector<32x44xbf16> to vector<32x32xbf16>
      %258 = vector.extract_strided_slice %255 {offsets = [0, 8], sizes = [32, 32], strides = [1, 1]} : vector<32x44xbf16> to vector<32x32xbf16>
      %259 = vector.extract_strided_slice %255 {offsets = [0, 12], sizes = [32, 32], strides = [1, 1]} : vector<32x44xbf16> to vector<32x32xbf16>
      %260 = tpu.concatenate %256, %257, %258, %259 in 0 : vector<32x32xbf16>, vector<32x32xbf16>, vector<32x32xbf16>, vector<32x32xbf16> -> vector<128x32xbf16>
      %261 = arith.index_cast %251 : i32 to index
      %c0_89 = arith.constant 0 : index
      %c0_90 = arith.constant 0 : index
      %262 = vector.load %arg5[%261, %c0_89, %c0_90] : memref<26x32x128xbf16, #tpu.memory_space<vmem>>, vector<1x32x128xbf16>
      %263 = vector.shape_cast %262 : vector<1x32x128xbf16> to vector<32x128xbf16>
      %cst_91 = arith.constant dense<0.000000e+00> : vector<32x32xf32>
      %264 = tpu.matmul %263, %260, %cst_91 {dimension_numbers = #tpu.dot_dimension_numbers<[1], [0], [0], [1], [0, 0, 1, 1], [], []>} : vector<32x128xbf16>, vector<128x32xbf16>, vector<32x32xf32> -> vector<32x32xf32>
      %265 = arith.index_cast %251 : i32 to index
      %c0_92 = arith.constant 0 : index
      %c0_93 = arith.constant 0 : index
      %266 = vector.load %arg6[%265, %c0_92, %c0_93] : memref<26x32x3xf32, #tpu.memory_space<vmem>>, vector<1x32x3xf32>
      %267 = vector.shape_cast %266 : vector<1x32x3xf32> to vector<32x3xf32>
      %268 = vector.extract_strided_slice %267 {offsets = [0, 0], sizes = [32, 1], strides = [1, 1]} : vector<32x3xf32> to vector<32x1xf32>
      %269 = vector.broadcast %268 : vector<32x1xf32> to vector<32x32xf32>
      %270 = arith.addf %264, %269 : vector<32x32xf32>
      %271 = vector.broadcast %25 : vector<1x32xf32> to vector<32x32xf32>
      %272 = arith.mulf %270, %271 : vector<32x32xf32>
      %cst_94 = arith.constant 0.000000e+00 : f32
      %273 = vector.broadcast %cst_94 : f32 to vector<32x32xf32>
      %274 = arith.maximumf %272, %273 : vector<32x32xf32>
      %275 = vector.extract_strided_slice %267 {offsets = [0, 1], sizes = [32, 1], strides = [1, 1]} : vector<32x3xf32> to vector<32x1xf32>
      %276 = vector.broadcast %275 : vector<32x1xf32> to vector<32x32xf32>
      %277 = arith.mulf %274, %276 : vector<32x32xf32>
      %278 = vector.extract_strided_slice %267 {offsets = [0, 2], sizes = [32, 1], strides = [1, 1]} : vector<32x3xf32> to vector<32x1xf32>
      %279 = vector.broadcast %278 : vector<32x1xf32> to vector<32x32xf32>
      %280 = arith.addf %277, %279 : vector<32x32xf32>
      %c1_i32_95 = arith.constant 1 : i32
      %281 = arith.addi %250, %c1_i32_95 : i32
      %282 = arith.truncf %280 : vector<32x32xf32> to vector<32x32xbf16>
      %cst_96 = arith.constant 0.000000e+00 : bf16
      %283 = vector.broadcast %cst_96 : bf16 to vector<32x6xbf16>
      %cst_97 = arith.constant 0.000000e+00 : bf16
      %284 = vector.broadcast %cst_97 : bf16 to vector<32x6xbf16>
      %285 = tpu.concatenate %283, %282, %284 in 1 : vector<32x6xbf16>, vector<32x32xbf16>, vector<32x6xbf16> -> vector<32x44xbf16>
      %286 = vector.extract_strided_slice %285 {offsets = [0, 0], sizes = [32, 32], strides = [1, 1]} : vector<32x44xbf16> to vector<32x32xbf16>
      %287 = vector.extract_strided_slice %285 {offsets = [0, 4], sizes = [32, 32], strides = [1, 1]} : vector<32x44xbf16> to vector<32x32xbf16>
      %288 = vector.extract_strided_slice %285 {offsets = [0, 8], sizes = [32, 32], strides = [1, 1]} : vector<32x44xbf16> to vector<32x32xbf16>
      %289 = vector.extract_strided_slice %285 {offsets = [0, 12], sizes = [32, 32], strides = [1, 1]} : vector<32x44xbf16> to vector<32x32xbf16>
      %290 = tpu.concatenate %286, %287, %288, %289 in 0 : vector<32x32xbf16>, vector<32x32xbf16>, vector<32x32xbf16>, vector<32x32xbf16> -> vector<128x32xbf16>
      %291 = arith.index_cast %281 : i32 to index
      %c0_98 = arith.constant 0 : index
      %c0_99 = arith.constant 0 : index
      %292 = vector.load %arg5[%291, %c0_98, %c0_99] : memref<26x32x128xbf16, #tpu.memory_space<vmem>>, vector<1x32x128xbf16>
      %293 = vector.shape_cast %292 : vector<1x32x128xbf16> to vector<32x128xbf16>
      %cst_100 = arith.constant dense<0.000000e+00> : vector<32x32xf32>
      %294 = tpu.matmul %293, %290, %cst_100 {dimension_numbers = #tpu.dot_dimension_numbers<[1], [0], [0], [1], [0, 0, 1, 1], [], []>} : vector<32x128xbf16>, vector<128x32xbf16>, vector<32x32xf32> -> vector<32x32xf32>
      %295 = arith.index_cast %281 : i32 to index
      %c0_101 = arith.constant 0 : index
      %c0_102 = arith.constant 0 : index
      %296 = vector.load %arg6[%295, %c0_101, %c0_102] : memref<26x32x3xf32, #tpu.memory_space<vmem>>, vector<1x32x3xf32>
      %297 = vector.shape_cast %296 : vector<1x32x3xf32> to vector<32x3xf32>
      %298 = vector.extract_strided_slice %297 {offsets = [0, 0], sizes = [32, 1], strides = [1, 1]} : vector<32x3xf32> to vector<32x1xf32>
      %299 = vector.broadcast %298 : vector<32x1xf32> to vector<32x32xf32>
      %300 = arith.addf %294, %299 : vector<32x32xf32>
      %301 = vector.broadcast %25 : vector<1x32xf32> to vector<32x32xf32>
      %302 = arith.mulf %300, %301 : vector<32x32xf32>
      %cst_103 = arith.constant 0.000000e+00 : f32
      %303 = vector.broadcast %cst_103 : f32 to vector<32x32xf32>
      %304 = arith.maximumf %302, %303 : vector<32x32xf32>
      %305 = vector.extract_strided_slice %297 {offsets = [0, 1], sizes = [32, 1], strides = [1, 1]} : vector<32x3xf32> to vector<32x1xf32>
      %306 = vector.broadcast %305 : vector<32x1xf32> to vector<32x32xf32>
      %307 = arith.mulf %304, %306 : vector<32x32xf32>
      %308 = vector.extract_strided_slice %297 {offsets = [0, 2], sizes = [32, 1], strides = [1, 1]} : vector<32x3xf32> to vector<32x1xf32>
      %309 = vector.broadcast %308 : vector<32x1xf32> to vector<32x32xf32>
      %310 = arith.addf %307, %309 : vector<32x32xf32>
      %311 = arith.addf %310, %249 : vector<32x32xf32>
      %312 = vector.broadcast %3 : vector<1x32xf32> to vector<32x32xf32>
      %313 = arith.mulf %311, %312 : vector<32x32xf32>
      scf.yield %313 : vector<32x32xf32>
    }
    %c4_i32_11 = arith.constant 4 : i32
    %38 = arith.truncf %37 : vector<32x32xf32> to vector<32x32xbf16>
    %cst_12 = arith.constant 0.000000e+00 : bf16
    %39 = vector.broadcast %cst_12 : bf16 to vector<32x1xbf16>
    %cst_13 = arith.constant 0.000000e+00 : bf16
    %40 = vector.broadcast %cst_13 : bf16 to vector<32x2xbf16>
    %41 = tpu.concatenate %39, %38, %40 in 1 : vector<32x1xbf16>, vector<32x32xbf16>, vector<32x2xbf16> -> vector<32x35xbf16>
    %42 = vector.extract_strided_slice %41 {offsets = [0, 0], sizes = [32, 32], strides = [1, 1]} : vector<32x35xbf16> to vector<32x32xbf16>
    %43 = vector.extract_strided_slice %41 {offsets = [0, 1], sizes = [32, 32], strides = [1, 1]} : vector<32x35xbf16> to vector<32x32xbf16>
    %44 = vector.extract_strided_slice %41 {offsets = [0, 2], sizes = [32, 32], strides = [1, 1]} : vector<32x35xbf16> to vector<32x32xbf16>
    %45 = vector.extract_strided_slice %41 {offsets = [0, 3], sizes = [32, 32], strides = [1, 1]} : vector<32x35xbf16> to vector<32x32xbf16>
    %46 = tpu.concatenate %42, %43, %44, %45 in 0 : vector<32x32xbf16>, vector<32x32xbf16>, vector<32x32xbf16>, vector<32x32xbf16> -> vector<128x32xbf16>
    %c24 = arith.constant 24 : index
    %c0_14 = arith.constant 0 : index
    %c0_15 = arith.constant 0 : index
    %47 = vector.load %arg5[%c24, %c0_14, %c0_15] : memref<26x32x128xbf16, #tpu.memory_space<vmem>>, vector<1x32x128xbf16>
    %48 = vector.shape_cast %47 : vector<1x32x128xbf16> to vector<32x128xbf16>
    %cst_16 = arith.constant dense<0.000000e+00> : vector<32x32xf32>
    %49 = tpu.matmul %48, %46, %cst_16 {dimension_numbers = #tpu.dot_dimension_numbers<[1], [0], [0], [1], [0, 0, 1, 1], [], []>} : vector<32x128xbf16>, vector<128x32xbf16>, vector<32x32xf32> -> vector<32x32xf32>
    %c24_17 = arith.constant 24 : index
    %c0_18 = arith.constant 0 : index
    %c0_19 = arith.constant 0 : index
    %50 = vector.load %arg6[%c24_17, %c0_18, %c0_19] : memref<26x32x3xf32, #tpu.memory_space<vmem>>, vector<1x32x3xf32>
    %51 = vector.shape_cast %50 : vector<1x32x3xf32> to vector<32x3xf32>
    %52 = vector.extract_strided_slice %51 {offsets = [0, 0], sizes = [32, 1], strides = [1, 1]} : vector<32x3xf32> to vector<32x1xf32>
    %53 = vector.broadcast %52 : vector<32x1xf32> to vector<32x32xf32>
    %54 = arith.addf %49, %53 : vector<32x32xf32>
    %55 = vector.broadcast %11 : vector<1x32xf32> to vector<32x32xf32>
    %56 = arith.mulf %54, %55 : vector<32x32xf32>
    %cst_20 = arith.constant 0.000000e+00 : f32
    %57 = vector.broadcast %cst_20 : f32 to vector<32x32xf32>
    %58 = arith.maximumf %56, %57 : vector<32x32xf32>
    %59 = vector.extract_strided_slice %51 {offsets = [0, 1], sizes = [32, 1], strides = [1, 1]} : vector<32x3xf32> to vector<32x1xf32>
    %60 = vector.broadcast %59 : vector<32x1xf32> to vector<32x32xf32>
    %61 = arith.mulf %58, %60 : vector<32x32xf32>
    %62 = vector.extract_strided_slice %51 {offsets = [0, 2], sizes = [32, 1], strides = [1, 1]} : vector<32x3xf32> to vector<32x1xf32>
    %63 = vector.broadcast %62 : vector<32x1xf32> to vector<32x32xf32>
    %64 = arith.addf %61, %63 : vector<32x32xf32>
    %65 = arith.truncf %64 : vector<32x32xf32> to vector<32x32xbf16>
    %cst_21 = arith.constant 0.000000e+00 : bf16
    %66 = vector.broadcast %cst_21 : bf16 to vector<32x1xbf16>
    %cst_22 = arith.constant 0.000000e+00 : bf16
    %67 = vector.broadcast %cst_22 : bf16 to vector<32x2xbf16>
    %68 = tpu.concatenate %66, %65, %67 in 1 : vector<32x1xbf16>, vector<32x32xbf16>, vector<32x2xbf16> -> vector<32x35xbf16>
    %69 = vector.extract_strided_slice %68 {offsets = [0, 0], sizes = [32, 32], strides = [1, 1]} : vector<32x35xbf16> to vector<32x32xbf16>
    %70 = vector.extract_strided_slice %68 {offsets = [0, 1], sizes = [32, 32], strides = [1, 1]} : vector<32x35xbf16> to vector<32x32xbf16>
    %71 = vector.extract_strided_slice %68 {offsets = [0, 2], sizes = [32, 32], strides = [1, 1]} : vector<32x35xbf16> to vector<32x32xbf16>
    %72 = vector.extract_strided_slice %68 {offsets = [0, 3], sizes = [32, 32], strides = [1, 1]} : vector<32x35xbf16> to vector<32x32xbf16>
    %73 = tpu.concatenate %69, %70, %71, %72 in 0 : vector<32x32xbf16>, vector<32x32xbf16>, vector<32x32xbf16>, vector<32x32xbf16> -> vector<128x32xbf16>
    %c25 = arith.constant 25 : index
    %c0_23 = arith.constant 0 : index
    %c0_24 = arith.constant 0 : index
    %74 = vector.load %arg5[%c25, %c0_23, %c0_24] : memref<26x32x128xbf16, #tpu.memory_space<vmem>>, vector<1x32x128xbf16>
    %75 = vector.shape_cast %74 : vector<1x32x128xbf16> to vector<32x128xbf16>
    %cst_25 = arith.constant dense<0.000000e+00> : vector<32x32xf32>
    %76 = tpu.matmul %75, %73, %cst_25 {dimension_numbers = #tpu.dot_dimension_numbers<[1], [0], [0], [1], [0, 0, 1, 1], [], []>} : vector<32x128xbf16>, vector<128x32xbf16>, vector<32x32xf32> -> vector<32x32xf32>
    %c25_26 = arith.constant 25 : index
    %c0_27 = arith.constant 0 : index
    %c0_28 = arith.constant 0 : index
    %77 = vector.load %arg6[%c25_26, %c0_27, %c0_28] : memref<26x32x3xf32, #tpu.memory_space<vmem>>, vector<1x32x3xf32>
    %78 = vector.shape_cast %77 : vector<1x32x3xf32> to vector<32x3xf32>
    %79 = vector.extract_strided_slice %78 {offsets = [0, 0], sizes = [32, 1], strides = [1, 1]} : vector<32x3xf32> to vector<32x1xf32>
    %80 = vector.broadcast %79 : vector<32x1xf32> to vector<32x32xf32>
    %81 = arith.addf %76, %80 : vector<32x32xf32>
    %82 = vector.broadcast %11 : vector<1x32xf32> to vector<32x32xf32>
    %83 = arith.mulf %81, %82 : vector<32x32xf32>
    %cst_29 = arith.constant 0.000000e+00 : f32
    %84 = vector.broadcast %cst_29 : f32 to vector<32x32xf32>
    %85 = arith.maximumf %83, %84 : vector<32x32xf32>
    %86 = vector.extract_strided_slice %78 {offsets = [0, 1], sizes = [32, 1], strides = [1, 1]} : vector<32x3xf32> to vector<32x1xf32>
    %87 = vector.broadcast %86 : vector<32x1xf32> to vector<32x32xf32>
    %88 = arith.mulf %85, %87 : vector<32x32xf32>
    %89 = vector.extract_strided_slice %78 {offsets = [0, 2], sizes = [32, 1], strides = [1, 1]} : vector<32x3xf32> to vector<32x1xf32>
    %90 = vector.broadcast %89 : vector<32x1xf32> to vector<32x32xf32>
    %91 = arith.addf %88, %90 : vector<32x32xf32>
    %92 = arith.addf %91, %37 : vector<32x32xf32>
    %93 = vector.broadcast %3 : vector<1x32xf32> to vector<32x32xf32>
    %94 = arith.mulf %92, %93 : vector<32x32xf32>
    %95 = arith.addf %94, %1 : vector<32x32xf32>
    %c0_30 = arith.constant 0 : index
    %c0_31 = arith.constant 0 : index
    %96 = vector.load %arg7[%c0_30, %c0_31] : memref<32x32xbf16, #tpu.memory_space<vmem>>, vector<32x32xbf16>
    %97 = arith.truncf %95 : vector<32x32xf32> to vector<32x32xbf16>
    %cst_32 = arith.constant dense<0.000000e+00> : vector<32x32xf32>
    %98 = tpu.matmul %96, %97, %cst_32 {dimension_numbers = #tpu.dot_dimension_numbers<[1], [0], [0], [1], [0, 0, 1, 1], [], []>} : vector<32x32xbf16>, vector<32x32xbf16>, vector<32x32xf32> -> vector<32x32xf32>
    %c0_33 = arith.constant 0 : index
    %c0_34 = arith.constant 0 : index
    %99 = vector.load %arg8[%c0_33, %c0_34] : memref<32x1xf32, #tpu.memory_space<vmem>>, vector<32x1xf32>
    %100 = vector.broadcast %99 : vector<32x1xf32> to vector<32x32xf32>
    %101 = arith.addf %98, %100 : vector<32x32xf32>
    %cst_35 = arith.constant 0.000000e+00 : f32
    %102 = vector.broadcast %cst_35 : f32 to vector<32x32xf32>
    %103 = arith.maximumf %101, %102 : vector<32x32xf32>
    %c0_36 = arith.constant 0 : index
    %c0_37 = arith.constant 0 : index
    %104 = vector.load %arg9[%c0_36, %c0_37] : memref<32x2xf32, #tpu.memory_space<vmem>>, vector<32x1xf32>
    %105 = vector.broadcast %104 : vector<32x1xf32> to vector<32x32xf32>
    %106 = arith.mulf %103, %105 : vector<32x32xf32>
    %c0_38 = arith.constant 0 : index
    %c1 = arith.constant 1 : index
    %107 = vector.load %arg9[%c0_38, %c1] : memref<32x2xf32, #tpu.memory_space<vmem>>, vector<32x1xf32>
    %108 = vector.broadcast %107 : vector<32x1xf32> to vector<32x32xf32>
    %109 = arith.addf %106, %108 : vector<32x32xf32>
    %c0_39 = arith.constant 0 : index
    %c0_40 = arith.constant 0 : index
    %110 = vector.load %arg10[%c0_39, %c0_40] : memref<16x32xbf16, #tpu.memory_space<vmem>>, vector<16x32xbf16>
    %111 = arith.truncf %109 : vector<32x32xf32> to vector<32x32xbf16>
    %cst_41 = arith.constant dense<0.000000e+00> : vector<16x32xf32>
    %112 = tpu.matmul %110, %111, %cst_41 {dimension_numbers = #tpu.dot_dimension_numbers<[1], [0], [0], [1], [0, 0, 1, 1], [], []>} : vector<16x32xbf16>, vector<32x32xbf16>, vector<16x32xf32> -> vector<16x32xf32>
    %c0_42 = arith.constant 0 : index
    %c0_43 = arith.constant 0 : index
    %113 = vector.load %arg11[%c0_42, %c0_43] : memref<16x1xf32, #tpu.memory_space<vmem>>, vector<16x1xf32>
    %114 = vector.broadcast %113 : vector<16x1xf32> to vector<16x32xf32>
    %115 = arith.addf %112, %114 : vector<16x32xf32>
    %116 = vector.broadcast %3 : vector<1x32xf32> to vector<16x32xf32>
    %117 = arith.mulf %115, %116 : vector<16x32xf32>
    %c0_44 = arith.constant 0 : index
    %c0_45 = arith.constant 0 : index
    %c0_46 = arith.constant 0 : index
    %118 = vector.load %arg12[%c0_44, %c0_45, %c0_46] : memref<1x16x32xf32, #tpu.memory_space<vmem>>, vector<1x16x32xf32>
    %119 = vector.shape_cast %118 : vector<1x16x32xf32> to vector<16x32xf32>
    %120 = vector.shape_cast %117 : vector<16x32xf32> to vector<1x16x32xf32>
    tpu.vector_store %arg12[%c0_44, %c0_45, %c0_46], %120 {strides = array<i32>} : memref<1x16x32xf32, #tpu.memory_space<vmem>>, vector<1x16x32xf32>,
    return
  }
  func.func @transform_0(%arg0: i32) -> (i32, i32, i32) {
    %c0_i32 = arith.constant 0 : i32
    %c0_i32_0 = arith.constant 0 : i32
    %c0_i32_1 = arith.constant 0 : i32
    return %arg0, %c0_i32, %c0_i32_0 : i32, i32, i32
  }
  func.func @transform_1(%arg0: i32) -> (i32, i32, i32) {
    %c0_i32 = arith.constant 0 : i32
    %c0_i32_0 = arith.constant 0 : i32
    %c0_i32_1 = arith.constant 0 : i32
    return %arg0, %c0_i32, %c0_i32_0 : i32, i32, i32
  }
  func.func @transform_2(%arg0: i32) -> (i32, i32) {
    %c0_i32 = arith.constant 0 : i32
    %c0_i32_0 = arith.constant 0 : i32
    %c0_i32_1 = arith.constant 0 : i32
    return %c0_i32, %c0_i32_0 : i32, i32
  }
  func.func @transform_3(%arg0: i32) -> (i32, i32) {
    %c0_i32 = arith.constant 0 : i32
    %c0_i32_0 = arith.constant 0 : i32
    %c0_i32_1 = arith.constant 0 : i32
    return %c0_i32, %c0_i32_0 : i32, i32
  }
  func.func @transform_4(%arg0: i32) -> (i32, i32, i32) {
    %c0_i32 = arith.constant 0 : i32
    %c0_i32_0 = arith.constant 0 : i32
    %c0_i32_1 = arith.constant 0 : i32
    %c0_i32_2 = arith.constant 0 : i32
    return %c0_i32, %c0_i32_0, %c0_i32_1 : i32, i32, i32
  }
  func.func @transform_5(%arg0: i32) -> (i32, i32, i32) {
    %c0_i32 = arith.constant 0 : i32
    %c0_i32_0 = arith.constant 0 : i32
    %c0_i32_1 = arith.constant 0 : i32
    %c0_i32_2 = arith.constant 0 : i32
    return %c0_i32, %c0_i32_0, %c0_i32_1 : i32, i32, i32
  }
  func.func @transform_6(%arg0: i32) -> (i32, i32) {
    %c0_i32 = arith.constant 0 : i32
    %c0_i32_0 = arith.constant 0 : i32
    %c0_i32_1 = arith.constant 0 : i32
    return %c0_i32, %c0_i32_0 : i32, i32
  }
  func.func @transform_7(%arg0: i32) -> (i32, i32) {
    %c0_i32 = arith.constant 0 : i32
    %c0_i32_0 = arith.constant 0 : i32
    %c0_i32_1 = arith.constant 0 : i32
    return %c0_i32, %c0_i32_0 : i32, i32
  }
  func.func @transform_8(%arg0: i32) -> (i32, i32) {
    %c0_i32 = arith.constant 0 : i32
    %c0_i32_0 = arith.constant 0 : i32
    %c0_i32_1 = arith.constant 0 : i32
    return %c0_i32, %c0_i32_0 : i32, i32
  }
  func.func @transform_9(%arg0: i32) -> (i32, i32) {
    %c0_i32 = arith.constant 0 : i32
    %c0_i32_0 = arith.constant 0 : i32
    %c0_i32_1 = arith.constant 0 : i32
    return %c0_i32, %c0_i32_0 : i32, i32
  }
  func.func @transform_10(%arg0: i32) -> (i32, i32) {
    %c0_i32 = arith.constant 0 : i32
    %c0_i32_0 = arith.constant 0 : i32
    %c0_i32_1 = arith.constant 0 : i32
    return %c0_i32, %c0_i32_0 : i32, i32
  }
  func.func @transform_11(%arg0: i32) -> (i32, i32, i32) {
    %c0_i32 = arith.constant 0 : i32
    %c0_i32_0 = arith.constant 0 : i32
    %c0_i32_1 = arith.constant 0 : i32
    return %arg0, %c0_i32, %c0_i32_0 : i32, i32, i32
  }
}

</mosaic_0001>

<llo_original>
// kernel: _lambda_.1
$region0: #{_lambda_.1}
  #allocation0 [shape = 'u32[]', space=smem, size = 0x4, offset = 0x4, fixed_abs, tag = 'smem constant byte address 0x4 - core index']
  #allocation1 [shape = 'u32[144,128]{1,0:T(1,128)}', space=vmem, size = 0x12000, scoped, tag = 'internal scratch']
  %s0 = inlined_call_operand.hbm [shape: f32[2,32,32], index: 0, kind: input, shape index: {}]
  %s1 = inlined_call_operand.hbm [shape: f32[2,1,32], index: 1, kind: input, shape index: {}]
  %s2 = inlined_call_operand.hbm [shape: bf16[32,32], index: 2, kind: input, shape index: {}]
  %s3 = inlined_call_operand.hbm [shape: f32[32,1], index: 3, kind: input, shape index: {}]
  %s4 = inlined_call_operand.hbm [shape: bf16[26,32,128], index: 4, kind: input, shape index: {}]
  %s5 = inlined_call_operand.hbm [shape: f32[26,32,3], index: 5, kind: input, shape index: {}]
  %s6 = inlined_call_operand.hbm [shape: bf16[32,32], index: 6, kind: input, shape index: {}]
  %s7 = inlined_call_operand.hbm [shape: f32[32,1], index: 7, kind: input, shape index: {}]
  %s8 = inlined_call_operand.hbm [shape: f32[32,2], index: 8, kind: input, shape index: {}]
  %s9 = inlined_call_operand.hbm [shape: bf16[16,32], index: 9, kind: input, shape index: {}]
  %s10 = inlined_call_operand.vmem [shape: f32[16,1], index: 10, kind: input, shape index: {}]
  %s11 = inlined_call_operand.hbm [shape: f32[2,16,32], index: 11, kind: output, shape index: {}]
  %s12 = sld [smem:[#allocation0]]
  $region124: #{_lambda_.1} parent=0
    _
  %s14 = ssub.s32 1, %s12
  %s15 = scalar_select 0, %s14, %s12
  $region1: #{_lambda_.1} parent=0
    #allocation2 [shape = 'u8[32768]{0}', space=vmem, size = 0x8000, scoped, tag = 'input window, operand 0']
    #allocation3 [shape = 's32[2]{0}', space=sflag, size = 0x8, scoped, tag = 'scoped memory for _lambda_.1']
    #allocation4 [shape = 's32[2]{0}', space=sflag, size = 0x8, scoped, tag = 'scoped memory for _lambda_.1']
    #allocation5 [shape = 'u8[1024]{0}', space=vmem, size = 0x400, scoped, tag = 'input window, operand 1']
    #allocation6 [shape = 's32[2]{0}', space=sflag, size = 0x8, scoped, tag = 'scoped memory for _lambda_.1']
    #allocation7 [shape = 'u8[8192]{0}', space=vmem, size = 0x2000, scoped, tag = 'input window, operand 2, single buffered']
    #allocation8 [shape = 'u8[16384]{0}', space=vmem, size = 0x4000, scoped, tag = 'input window, operand 3, single buffered']
    #allocation9 [shape = 's32[1]{0}', space=sflag, size = 0x4, scoped, tag = 'scoped memory for _lambda_.1']
    #allocation10 [shape = 'u8[212992]{0}', space=vmem, size = 0x34000, scoped, tag = 'input window, operand 4, single buffered']
    #allocation11 [shape = 'u8[425984]{0}', space=vmem, size = 0x68000, scoped, tag = 'input window, operand 5, single buffered']
    #allocation12 [shape = 's32[1]{0}', space=sflag, size = 0x4, scoped, tag = 'scoped memory for _lambda_.1']
    #allocation13 [shape = 'u8[8192]{0}', space=vmem, size = 0x2000, scoped, tag = 'input window, operand 6, single buffered']
    #allocation14 [shape = 'u8[16384]{0}', space=vmem, size = 0x4000, scoped, tag = 'input window, operand 7, single buffered']
    #allocation15 [shape = 's32[1]{0}', space=sflag, size = 0x4, scoped, tag = 'scoped memory for _lambda_.1']
    #allocation16 [shape = 'u8[16384]{0}', space=vmem, size = 0x4000, scoped, tag = 'input window, operand 8, single buffered']
    #allocation17 [shape = 'u8[4096]{0}', space=vmem, size = 0x1000, scoped, tag = 'input window, operand 9, single buffered']
    #allocation18 [shape = 's32[1]{0}', space=sflag, size = 0x4, scoped, tag = 'scoped memory for _lambda_.1']
    #allocation19 [shape = 'u8[16384]{0}', space=vmem, size = 0x4000, scoped, tag = 'output window, operand 0']
    %16 = vsyncpa [#allocation3], 0
    %s17 = scalar_lea.sflag [#allocation3], 1
    %18 = vsyncpa %s17, 0
    %19 = vsyncpa [#allocation6], 0
    %s20 = scalar_lea.sflag [#allocation6], 1
    %21 = vsyncpa %s20, 0
    %22 = vsyncpa [#allocation9], 0
    %23 = vsyncpa [#allocation12], 0
    %24 = vsyncpa [#allocation15], 0
    %25 = vsyncpa [#allocation18], 0
    %26 = vsyncpa [#allocation4], 0
    %s27 = scalar_lea.sflag [#allocation4], 1
    %28 = vsyncpa %s27, 0
    loop: start=0, step=1, limit=4
    $region2: #{_lambda_.1} parent=1 // loop_pre_header
      _
    $region3: #{_lambda_.1} parent=1 // loop_header
      %s30 = sphi 0, %s34
      %p31 = scmp.ge.s32.totalorder %s30, 4
      %s40 = sphi 0, %s42
      %s43 = sphi 0, %s40
      %s44 = sphi 0, %s43
      %s60 = sphi 0, %s44
      %s66 = sphi 0, %s68
      %s69 = sphi 0, %s66
      %s70 = sphi 0, %s69
      %s86 = sphi 0, %s70
      %s90 = sphi 0, %s90
      %s92 = sphi 0, %s90
      %s93 = sphi 0, %s92
      %s107 = sphi 0, %s93
      %s111 = sphi 0, %s111
      %s113 = sphi 0, %s111
      %s114 = sphi 0, %s113
      %s128 = sphi 0, %s114
      %s132 = sphi 0, %s132
      %s134 = sphi 0, %s132
      %s135 = sphi 0, %s134
      %s149 = sphi 0, %s135
      %s153 = sphi 0, %s153
      %s155 = sphi 0, %s153
      %s156 = sphi 0, %s155
      %s170 = sphi 0, %s156
      %s174 = sphi 0, %s174
      %s176 = sphi 0, %s174
      %s177 = sphi 0, %s176
      %s191 = sphi 0, %s177
      %s195 = sphi 0, %s195
      %s197 = sphi 0, %s195
      %s198 = sphi 0, %s197
      %s212 = sphi 0, %s198
      %s216 = sphi 0, %s216
      %s218 = sphi 0, %s216
      %s219 = sphi 0, %s218
      %s233 = sphi 0, %s219
      %s237 = sphi 0, %s237
      %s239 = sphi 0, %s237
      %s240 = sphi 0, %s239
      %s254 = sphi 0, %s240
      %s258 = sphi 0, %s258
      %s260 = sphi 0, %s258
      %s261 = sphi 0, %s260
      %s275 = sphi 0, %s261
      %s281 = sphi 0, %s283
      %s284 = sphi 0, %s281
      %s285 = sphi 0, %s284
      %s301 = sphi 0, %s285
    $region4: #{_lambda_.1} parent=1 // loop_header_branch
      %33 = sbr.rel (%p31) target = $region8
    $region5: #{_lambda_.1} parent=1 // loop_body
      %s35 = ssub.s32 %s30, 1
      %s36 = ssub.s32 %s30, 2
      %s37 = sadd.s32 %s30, 1
      %s38 = ssub.s32 %s30, %s37
      %p39 = scmp.eq.s32.totalorder %s38, 0
      %s41 = sadd.s32 %s40, 1
      %s42 = scalar_select %p39, %s40, %s41
      %p45 = pneg %p39
      %p46 = scmp.eq.s32.totalorder %s30, 1
      %p47 = por %p45, %p46
      %p48 = scmp.ne.s32.totalorder %s40, %s43
      %p49 = scmp.eq.s32.totalorder %s30, 0
      %p50 = por %p48, %p49
      %p51 = scmp.ne.s32.totalorder %s40, %s43
      %p52 = scmp.eq.s32.totalorder %s35, 1
      %p53 = por %p51, %p52
      %p54 = scmp.ne.s32.totalorder %s43, %s44
      %p55 = scmp.eq.s32.totalorder %s35, 0
      %p56 = por %p54, %p55
      %p57 = scmp.ne.s32.totalorder %s43, %s44
      %p58 = scmp.eq.s32.totalorder %s36, 1
      %p59 = por %p57, %p58
      %p61 = scmp.ne.s32.totalorder %s44, %s60
      %p62 = scmp.eq.s32.totalorder %s36, 0
      %p63 = por %p61, %p62
      %s64 = ssub.s32 %s30, %s37
      %p65 = scmp.eq.s32.totalorder %s64, 0
      %s67 = sadd.s32 %s66, 1
      %s68 = scalar_select %p65, %s66, %s67
      %p71 = pneg %p65
      %p72 = scmp.eq.s32.totalorder %s30, 1
      %p73 = por %p71, %p72
      %p74 = scmp.ne.s32.totalorder %s66, %s69
      %p75 = scmp.eq.s32.totalorder %s30, 0
      %p76 = por %p74, %p75
      %p77 = scmp.ne.s32.totalorder %s66, %s69
      %p78 = scmp.eq.s32.totalorder %s35, 1
      %p79 = por %p77, %p78
      %p80 = scmp.ne.s32.totalorder %s69, %s70
      %p81 = scmp.eq.s32.totalorder %s35, 0
      %p82 = por %p80, %p81
      %p83 = scmp.ne.s32.totalorder %s69, %s70
      %p84 = scmp.eq.s32.totalorder %s36, 1
      %p85 = por %p83, %p84
      %p87 = scmp.ne.s32.totalorder %s70, %s86
      %p88 = scmp.eq.s32.totalorder %s36, 0
      %p89 = por %p87, %p88
      %s91 = sadd.s32 %s90, 1
      %p94 = scmp.eq.s32.totalorder %s30, 1
      %p95 = scmp.ne.s32.totalorder %s90, %s92
      %p96 = scmp.eq.s32.totalorder %s30, 0
      %p97 = por %p95, %p96
      %p98 = scmp.ne.s32.totalorder %s90, %s92
      %p99 = scmp.eq.s32.totalorder %s35, 1
      %p100 = por %p98, %p99
      %p101 = scmp.ne.s32.totalorder %s92, %s93
      %p102 = scmp.eq.s32.totalorder %s35, 0
      %p103 = por %p101, %p102
      %p104 = scmp.ne.s32.totalorder %s92, %s93
      %p105 = scmp.eq.s32.totalorder %s36, 1
      %p106 = por %p104, %p105
      %p108 = scmp.ne.s32.totalorder %s93, %s107
      %p109 = scmp.eq.s32.totalorder %s36, 0
      %p110 = por %p108, %p109
      %s112 = sadd.s32 %s111, 1
      %p115 = scmp.eq.s32.totalorder %s30, 1
      %p116 = scmp.ne.s32.totalorder %s111, %s113
      %p117 = scmp.eq.s32.totalorder %s30, 0
      %p118 = por %p116, %p117
      %p119 = scmp.ne.s32.totalorder %s111, %s113
      %p120 = scmp.eq.s32.totalorder %s35, 1
      %p121 = por %p119, %p120
      %p122 = scmp.ne.s32.totalorder %s113, %s114
      %p123 = scmp.eq.s32.totalorder %s35, 0
      %p124 = por %p122, %p123
      %p125 = scmp.ne.s32.totalorder %s113, %s114
      %p126 = scmp.eq.s32.totalorder %s36, 1
      %p127 = por %p125, %p126
      %p129 = scmp.ne.s32.totalorder %s114, %s128
      %p130 = scmp.eq.s32.totalorder %s36, 0
      %p131 = por %p129, %p130
      %s133 = sadd.s32 %s132, 1
      %p136 = scmp.eq.s32.totalorder %s30, 1
      %p137 = scmp.ne.s32.totalorder %s132, %s134
      %p138 = scmp.eq.s32.totalorder %s30, 0
      %p139 = por %p137, %p138
      %p140 = scmp.ne.s32.totalorder %s132, %s134
      %p141 = scmp.eq.s32.totalorder %s35, 1
      %p142 = por %p140, %p141
      %p143 = scmp.ne.s32.totalorder %s134, %s135
      %p144 = scmp.eq.s32.totalorder %s35, 0
      %p145 = por %p143, %p144
      %p146 = scmp.ne.s32.totalorder %s134, %s135
      %p147 = scmp.eq.s32.totalorder %s36, 1
      %p148 = por %p146, %p147
      %p150 = scmp.ne.s32.totalorder %s135, %s149
      %p151 = scmp.eq.s32.totalorder %s36, 0
      %p152 = por %p150, %p151
      %s154 = sadd.s32 %s153, 1
      %p157 = scmp.eq.s32.totalorder %s30, 1
      %p158 = scmp.ne.s32.totalorder %s153, %s155
      %p159 = scmp.eq.s32.totalorder %s30, 0
      %p160 = por %p158, %p159
      %p161 = scmp.ne.s32.totalorder %s153, %s155
      %p162 = scmp.eq.s32.totalorder %s35, 1
      %p163 = por %p161, %p162
      %p164 = scmp.ne.s32.totalorder %s155, %s156
      %p165 = scmp.eq.s32.totalorder %s35, 0
      %p166 = por %p164, %p165
      %p167 = scmp.ne.s32.totalorder %s155, %s156
      %p168 = scmp.eq.s32.totalorder %s36, 1
      %p169 = por %p167, %p168
      %p171 = scmp.ne.s32.totalorder %s156, %s170
      %p172 = scmp.eq.s32.totalorder %s36, 0
      %p173 = por %p171, %p172
      %s175 = sadd.s32 %s174, 1
      %p178 = scmp.eq.s32.totalorder %s30, 1
      %p179 = scmp.ne.s32.totalorder %s174, %s176
      %p180 = scmp.eq.s32.totalorder %s30, 0
      %p181 = por %p179, %p180
      %p182 = scmp.ne.s32.totalorder %s174, %s176
      %p183 = scmp.eq.s32.totalorder %s35, 1
      %p184 = por %p182, %p183
      %p185 = scmp.ne.s32.totalorder %s176, %s177
      %p186 = scmp.eq.s32.totalorder %s35, 0
      %p187 = por %p185, %p186
      %p188 = scmp.ne.s32.totalorder %s176, %s177
      %p189 = scmp.eq.s32.totalorder %s36, 1
      %p190 = por %p188, %p189
      %p192 = scmp.ne.s32.totalorder %s177, %s191
      %p193 = scmp.eq.s32.totalorder %s36, 0
      %p194 = por %p192, %p193
      %s196 = sadd.s32 %s195, 1
      %p199 = scmp.eq.s32.totalorder %s30, 1
      %p200 = scmp.ne.s32.totalorder %s195, %s197
      %p201 = scmp.eq.s32.totalorder %s30, 0
      %p202 = por %p200, %p201
      %p203 = scmp.ne.s32.totalorder %s195, %s197
      %p204 = scmp.eq.s32.totalorder %s35, 1
      %p205 = por %p203, %p204
      %p206 = scmp.ne.s32.totalorder %s197, %s198
      %p207 = scmp.eq.s32.totalorder %s35, 0
      %p208 = por %p206, %p207
      %p209 = scmp.ne.s32.totalorder %s197, %s198
      %p210 = scmp.eq.s32.totalorder %s36, 1
      %p211 = por %p209, %p210
      %p213 = scmp.ne.s32.totalorder %s198, %s212
      %p214 = scmp.eq.s32.totalorder %s36, 0
      %p215 = por %p213, %p214
      %s217 = sadd.s32 %s216, 1
      %p220 = scmp.eq.s32.totalorder %s30, 1
      %p221 = scmp.ne.s32.totalorder %s216, %s218
      %p222 = scmp.eq.s32.totalorder %s30, 0
      %p223 = por %p221, %p222
      %p224 = scmp.ne.s32.totalorder %s216, %s218
      %p225 = scmp.eq.s32.totalorder %s35, 1
      %p226 = por %p224, %p225
      %p227 = scmp.ne.s32.totalorder %s218, %s219
      %p228 = scmp.eq.s32.totalorder %s35, 0
      %p229 = por %p227, %p228
      %p230 = scmp.ne.s32.totalorder %s218, %s219
      %p231 = scmp.eq.s32.totalorder %s36, 1
      %p232 = por %p230, %p231
      %p234 = scmp.ne.s32.totalorder %s219, %s233
      %p235 = scmp.eq.s32.totalorder %s36, 0
      %p236 = por %p234, %p235
      %s238 = sadd.s32 %s237, 1
      %p241 = scmp.eq.s32.totalorder %s30, 1
      %p242 = scmp.ne.s32.totalorder %s237, %s239
      %p243 = scmp.eq.s32.totalorder %s30, 0
      %p244 = por %p242, %p243
      %p245 = scmp.ne.s32.totalorder %s237, %s239
      %p246 = scmp.eq.s32.totalorder %s35, 1
      %p247 = por %p245, %p246
      %p248 = scmp.ne.s32.totalorder %s239, %s240
      %p249 = scmp.eq.s32.totalorder %s35, 0
      %p250 = por %p248, %p249
      %p251 = scmp.ne.s32.totalorder %s239, %s240
      %p252 = scmp.eq.s32.totalorder %s36, 1
      %p253 = por %p251, %p252
      %p255 = scmp.ne.s32.totalorder %s240, %s254
      %p256 = scmp.eq.s32.totalorder %s36, 0
      %p257 = por %p255, %p256
      %s259 = sadd.s32 %s258, 1
      %p262 = scmp.eq.s32.totalorder %s30, 1
      %p263 = scmp.ne.s32.totalorder %s258, %s260
      %p264 = scmp.eq.s32.totalorder %s30, 0
      %p265 = por %p263, %p264
      %p266 = scmp.ne.s32.totalorder %s258, %s260
      %p267 = scmp.eq.s32.totalorder %s35, 1
      %p268 = por %p266, %p267
      %p269 = scmp.ne.s32.totalorder %s260, %s261
      %p270 = scmp.eq.s32.totalorder %s35, 0
      %p271 = por %p269, %p270
      %p272 = scmp.ne.s32.totalorder %s260, %s261
      %p273 = scmp.eq.s32.totalorder %s36, 1
      %p274 = por %p272, %p273
      %p276 = scmp.ne.s32.totalorder %s261, %s275
      %p277 = scmp.eq.s32.totalorder %s36, 0
      %p278 = por %p276, %p277
      %s279 = ssub.s32 %s30, %s37
      %p280 = scmp.eq.s32.totalorder %s279, 0
      %s282 = sadd.s32 %s281, 1
      %s283 = scalar_select %p280, %s281, %s282
      %p286 = pneg %p280
      %p287 = scmp.eq.s32.totalorder %s30, 1
      %p288 = por %p286, %p287
      %p289 = scmp.ne.s32.totalorder %s281, %s284
      %p290 = scmp.eq.s32.totalorder %s30, 0
      %p291 = por %p289, %p290
      %p292 = scmp.ne.s32.totalorder %s281, %s284
      %p293 = scmp.eq.s32.totalorder %s35, 1
      %p294 = por %p292, %p293
      %p295 = scmp.ne.s32.totalorder %s284, %s285
      %p296 = scmp.eq.s32.totalorder %s35, 0
      %p297 = por %p295, %p296
      %p298 = scmp.ne.s32.totalorder %s284, %s285
      %p299 = scmp.eq.s32.totalorder %s36, 1
      %p300 = por %p298, %p299
      %p302 = scmp.ne.s32.totalorder %s285, %s301
      %p303 = scmp.eq.s32.totalorder %s36, 0
      %p304 = por %p302, %p303
      %p305 = scmp.le.s32.totalorder 1, %s30
      %p306 = scmp.lt.s32.totalorder %s30, 3
      %p307 = pnand %p305, %p306
      %p308 = pneg %p307
      // Predicated region
      $region9: #{_lambda_.1} parent=5 // pred_check
        _
      $region10: #{_lambda_.1} parent=5 // pred_check_branch
        %310 = sbr.rel (%p307) target = $region12
      $region11: #{_lambda_.1} parent=5 // pred_region
        %s311 = ssub.s32 %s30, 1
        // Predicated region
        $region13: #{_lambda_.1} parent=11 // pred_check
          %p312 = pneg %p103
        $region14: #{_lambda_.1} parent=11 // pred_check_branch
          %314 = sbr.rel (%p312) target = $region16
        $region15: #{_lambda_.1} parent=11 // pred_region
          %s316 = ssub.s32 256, 256
          %317 = vsyncadd [#allocation6], %s316
          %s318 = sshll.u32 [#allocation7], 4
          %s319 = int_to_ptr.vmem [resolvable:$true] %s318
          %324 = dma.hbm_to_vmem [thread:$0]  %s2, 256, %s319, [#allocation6], 64, 64, 4
        $region16: #{_lambda_.1} parent=11 // pred_fallthru
          _
        // Predicated region
        $region17: #{_lambda_.1} parent=11 // pred_check
          %p325 = pneg %p124
        $region18: #{_lambda_.1} parent=11 // pred_check_branch
          %327 = sbr.rel (%p325) target = $region20
        $region19: #{_lambda_.1} parent=11 // pred_region
          %s329 = ssub.s32 512, 512
          %330 = vsyncadd [#allocation9], %s329
          %s331 = sshll.u32 [#allocation8], 4
          %s332 = int_to_ptr.vmem [resolvable:$true] %s331
          %337 = dma.hbm_to_vmem [thread:$0]  %s3, 512, %s332, [#allocation9], 128, 128, 8
        $region20: #{_lambda_.1} parent=11 // pred_fallthru
          _
        // Predicated region
        $region21: #{_lambda_.1} parent=11 // pred_check
          %p338 = pneg %p145
        $region22: #{_lambda_.1} parent=11 // pred_check_branch
          %340 = sbr.rel (%p338) target = $region24
        $region23: #{_lambda_.1} parent=11 // pred_region
          %s342 = ssub.s32 6656, 6656
          %343 = vsyncadd [#allocation9], %s342
          %s344 = sshll.u32 [#allocation10], 4
          %s345 = int_to_ptr.vmem [resolvable:$true] %s344
          %350 = dma.hbm_to_vmem [thread:$0]  %s4, 6656, %s345, [#allocation9], 64, 64, 4
        $region24: #{_lambda_.1} parent=11 // pred_fallthru
          _
        // Predicated region
        $region25: #{_lambda_.1} parent=11 // pred_check
          %p351 = pneg %p166
        $region26: #{_lambda_.1} parent=11 // pred_check_branch
          %353 = sbr.rel (%p351) target = $region28
        $region27: #{_lambda_.1} parent=11 // pred_region
          %s355 = ssub.s32 13312, 13312
          %356 = vsyncadd [#allocation12], %s355
          %s357 = sshll.u32 [#allocation11], 4
          %s358 = int_to_ptr.vmem [resolvable:$true] %s357
          %363 = dma.hbm_to_vmem [thread:$0]  %s5, 13312, %s358, [#allocation12], 128, 128, 8
        $region28: #{_lambda_.1} parent=11 // pred_fallthru
          _
        // Predicated region
        $region29: #{_lambda_.1} parent=11 // pred_check
          %p364 = pneg %p187
        $region30: #{_lambda_.1} parent=11 // pred_check_branch
          %366 = sbr.rel (%p364) target = $region32
        $region31: #{_lambda_.1} parent=11 // pred_region
          %s368 = ssub.s32 256, 256
          %369 = vsyncadd [#allocation12], %s368
          %s370 = sshll.u32 [#allocation13], 4
          %s371 = int_to_ptr.vmem [resolvable:$true] %s370
          %376 = dma.hbm_to_vmem [thread:$0]  %s6, 256, %s371, [#allocation12], 64, 64, 4
        $region32: #{_lambda_.1} parent=11 // pred_fallthru
          _
        // Predicated region
        $region33: #{_lambda_.1} parent=11 // pred_check
          %p377 = pneg %p208
        $region34: #{_lambda_.1} parent=11 // pred_check_branch
          %379 = sbr.rel (%p377) target = $region36
        $region35: #{_lambda_.1} parent=11 // pred_region
          %s381 = ssub.s32 512, 512
          %382 = vsyncadd [#allocation15], %s381
          %s383 = sshll.u32 [#allocation14], 4
          %s384 = int_to_ptr.vmem [resolvable:$true] %s383
          %389 = dma.hbm_to_vmem [thread:$0]  %s7, 512, %s384, [#allocation15], 128, 128, 8
        $region36: #{_lambda_.1} parent=11 // pred_fallthru
          _
        // Predicated region
        $region37: #{_lambda_.1} parent=11 // pred_check
          %p390 = pneg %p229
        $region38: #{_lambda_.1} parent=11 // pred_check_branch
          %392 = sbr.rel (%p390) target = $region40
        $region39: #{_lambda_.1} parent=11 // pred_region
          %s394 = ssub.s32 512, 512
          %395 = vsyncadd [#allocation15], %s394
          %s396 = sshll.u32 [#allocation16], 4
          %s397 = int_to_ptr.vmem [resolvable:$true] %s396
          %402 = dma.hbm_to_vmem [thread:$0]  %s8, 512, %s397, [#allocation15], 128, 128, 8
        $region40: #{_lambda_.1} parent=11 // pred_fallthru
          _
        // Predicated region
        $region41: #{_lambda_.1} parent=11 // pred_check
          %p403 = pneg %p250
        $region42: #{_lambda_.1} parent=11 // pred_check_branch
          %405 = sbr.rel (%p403) target = $region44
        $region43: #{_lambda_.1} parent=11 // pred_region
          %s407 = ssub.s32 128, 128
          %408 = vsyncadd [#allocation18], %s407
          %s409 = sshll.u32 [#allocation17], 4
          %s410 = int_to_ptr.vmem [resolvable:$true] %s409
          %415 = dma.hbm_to_vmem [thread:$0]  %s9, 128, %s410, [#allocation18], 64, 64, 4
        $region44: #{_lambda_.1} parent=11 // pred_fallthru
          _
        // Predicated region
        $region45: #{_lambda_.1} parent=11 // pred_check
          %p416 = pneg %p271
        $region46: #{_lambda_.1} parent=11 // pred_check_branch
          %418 = sbr.rel (%p416) target = $region48
        $region47: #{_lambda_.1} parent=11 // pred_region
          _
        $region48: #{_lambda_.1} parent=11 // pred_fallthru
          _
      $region12: #{_lambda_.1} parent=5 // pred_fallthru
        _
      %p419 = scmp.lt.s32.totalorder %s30, 2
      // Predicated region
      $region49: #{_lambda_.1} parent=5 // pred_check
        %p420 = pneg %p419
      $region50: #{_lambda_.1} parent=5 // pred_check_branch
        %422 = sbr.rel (%p420) target = $region52
      $region51: #{_lambda_.1} parent=5 // pred_region
        // Predicated region
        $region53: #{_lambda_.1} parent=51 // pred_check
          %p423 = pneg %p50
        $region54: #{_lambda_.1} parent=51 // pred_check_branch
          %425 = sbr.rel (%p423) target = $region56
        $region55: #{_lambda_.1} parent=51 // pred_region
          %s426 = sand.u32 %s40, 1
          %s427 = scalar_lea.sflag [#allocation3], %s426
          %s428 = sand.u32 %s40, 1
          %s429 = smul.addr %s428, 32
          %s430 = scalar_lea.vmem [#allocation2], %s429
          %s432 = ssub.s32 512, 512
          %433 = vsyncadd %s427, %s432
          %s434 = smul.addr %s30, 4
          %s435 = smul.addr %s434, 128
          %s436 = scalar_lea.hbm %s0, %s435
          %s437 = sshll.u32 %s430, 4
          %s438 = int_to_ptr.vmem [resolvable:$true] %s437
          %443 = dma.hbm_to_vmem [thread:$0]  %s436, 512, %s438, %s427, 128, 128, 8
        $region56: #{_lambda_.1} parent=51 // pred_fallthru
          _
        // Predicated region
        $region57: #{_lambda_.1} parent=51 // pred_check
          %p444 = pneg %p76
        $region58: #{_lambda_.1} parent=51 // pred_check_branch
          %446 = sbr.rel (%p444) target = $region60
        $region59: #{_lambda_.1} parent=51 // pred_region
          %s447 = sand.u32 %s30, 1
          %s448 = scalar_lea.sflag [#allocation6], %s447
          %s449 = sand.u32 %s66, 1
          %s450 = scalar_lea.vmem [#allocation5], %s449
          %s452 = ssub.s32 16, 16
          %453 = vsyncadd %s448, %s452
          %s454 = smul.addr %s30, 16
          %s455 = scalar_lea.hbm %s1, %s454
          %s457 = sshll.u32 %s450, 4
          %s458 = int_to_ptr.vmem [resolvable:$true] %s457
          %460 = dma.hbm_to_vmem [thread:$0]  %s455, 16, %s458, %s448
        $region60: #{_lambda_.1} parent=51 // pred_fallthru
          _
      $region52: #{_lambda_.1} parent=5 // pred_fallthru
        _
      %p461 = scmp.le.s32.totalorder 1, %s30
      %p462 = scmp.lt.s32.totalorder %s30, 3
      %p463 = pnand %p461, %p462
      %p464 = pneg %p463
      // Predicated region
      $region61: #{_lambda_.1} parent=5 // pred_check
        _
      $region62: #{_lambda_.1} parent=5 // pred_check_branch
        %466 = sbr.rel (%p463) target = $region64
      $region63: #{_lambda_.1} parent=5 // pred_region
        %s467 = ssub.s32 %s30, 1
        %s468 = sand.u32 %s43, 1
        %s469 = scalar_lea.sflag [#allocation3], %s468
        %s470 = sand.u32 %s43, 1
        %s471 = smul.addr %s470, 32
        %s472 = scalar_lea.vmem [#allocation2], %s471
        // Predicated region
        $region65: #{_lambda_.1} parent=63 // pred_check
          %p473 = pneg %p56
        $region66: #{_lambda_.1} parent=63 // pred_check_branch
          %475 = sbr.rel (%p473) target = $region68
        $region67: #{_lambda_.1} parent=63 // pred_region
          %476 = dma.done %s469, 512
        $region68: #{_lambda_.1} parent=63 // pred_fallthru
          _
        %s477 = sand.u32 %s35, 1
        %s478 = scalar_lea.sflag [#allocation6], %s477
        %s479 = sand.u32 %s69, 1
        %s480 = scalar_lea.vmem [#allocation5], %s479
        // Predicated region
        $region69: #{_lambda_.1} parent=63 // pred_check
          %p481 = pneg %p82
        $region70: #{_lambda_.1} parent=63 // pred_check_branch
          %483 = sbr.rel (%p481) target = $region72
        $region71: #{_lambda_.1} parent=63 // pred_region
          %484 = dma.done %s478, 16
        $region72: #{_lambda_.1} parent=63 // pred_fallthru
          _
        // Predicated region
        $region73: #{_lambda_.1} parent=63 // pred_check
          %p485 = pneg %p103
        $region74: #{_lambda_.1} parent=63 // pred_check_branch
          %487 = sbr.rel (%p485) target = $region76
        $region75: #{_lambda_.1} parent=63 // pred_region
          %488 = dma.done [#allocation6], 256
        $region76: #{_lambda_.1} parent=63 // pred_fallthru
          _
        // Predicated region
        $region77: #{_lambda_.1} parent=63 // pred_check
          %p489 = pneg %p124
        $region78: #{_lambda_.1} parent=63 // pred_check_branch
          %491 = sbr.rel (%p489) target = $region80
        $region79: #{_lambda_.1} parent=63 // pred_region
          %492 = dma.done [#allocation9], 512
        $region80: #{_lambda_.1} parent=63 // pred_fallthru
          _
        // Predicated region
        $region81: #{_lambda_.1} parent=63 // pred_check
          %p493 = pneg %p145
        $region82: #{_lambda_.1} parent=63 // pred_check_branch
          %495 = sbr.rel (%p493) target = $region84
        $region83: #{_lambda_.1} parent=63 // pred_region
          %496 = dma.done [#allocation9], 6656
        $region84: #{_lambda_.1} parent=63 // pred_fallthru
          _
        // Predicated region
        $region85: #{_lambda_.1} parent=63 // pred_check
          %p497 = pneg %p166
        $region86: #{_lambda_.1} parent=63 // pred_check_branch
          %499 = sbr.rel (%p497) target = $region88
        $region87: #{_lambda_.1} parent=63 // pred_region
          %500 = dma.done [#allocation12], 13312
        $region88: #{_lambda_.1} parent=63 // pred_fallthru
          _
        // Predicated region
        $region89: #{_lambda_.1} parent=63 // pred_check
          %p501 = pneg %p187
        $region90: #{_lambda_.1} parent=63 // pred_check_branch
          %503 = sbr.rel (%p501) target = $region92
        $region91: #{_lambda_.1} parent=63 // pred_region
          %504 = dma.done [#allocation12], 256
        $region92: #{_lambda_.1} parent=63 // pred_fallthru
          _
        // Predicated region
        $region93: #{_lambda_.1} parent=63 // pred_check
          %p505 = pneg %p208
        $region94: #{_lambda_.1} parent=63 // pred_check_branch
          %507 = sbr.rel (%p505) target = $region96
        $region95: #{_lambda_.1} parent=63 // pred_region
          %508 = dma.done [#allocation15], 512
        $region96: #{_lambda_.1} parent=63 // pred_fallthru
          _
        // Predicated region
        $region97: #{_lambda_.1} parent=63 // pred_check
          %p509 = pneg %p229
        $region98: #{_lambda_.1} parent=63 // pred_check_branch
          %511 = sbr.rel (%p509) target = $region100
        $region99: #{_lambda_.1} parent=63 // pred_region
          %512 = dma.done [#allocation15], 512
        $region100: #{_lambda_.1} parent=63 // pred_fallthru
          _
        // Predicated region
        $region101: #{_lambda_.1} parent=63 // pred_check
          %p513 = pneg %p250
        $region102: #{_lambda_.1} parent=63 // pred_check_branch
          %515 = sbr.rel (%p513) target = $region104
        $region103: #{_lambda_.1} parent=63 // pred_region
          %516 = dma.done [#allocation18], 128
        $region104: #{_lambda_.1} parent=63 // pred_fallthru
          _
        %s517 = sand.u32 %s43, 1
        %s518 = scalar_lea.sflag [#allocation3], %s517
        %s519 = sand.u32 %s43, 1
        %s520 = smul.addr %s519, 32
        %s521 = scalar_lea.vmem [#allocation2], %s520
        %p522 = pneg %p56
        %p523 = pneg %p53
        %s524 = sand.u32 %s35, 1
        %s525 = scalar_lea.sflag [#allocation6], %s524
        %s526 = sand.u32 %s69, 1
        %s527 = scalar_lea.vmem [#allocation5], %s526
        %p528 = pneg %p82
        %p529 = pneg %p79
        %p530 = pneg %p103
        %p531 = pneg %p100
        %p532 = pneg %p124
        %p533 = pneg %p121
        %p534 = pneg %p145
        %p535 = pneg %p142
        %p536 = pneg %p166
        %p537 = pneg %p163
        %p538 = pneg %p187
        %p539 = pneg %p184
        %p540 = pneg %p208
        %p541 = pneg %p205
        %p542 = pneg %p229
        %p543 = pneg %p226
        %p544 = pneg %p250
        %p545 = pneg %p247
        %p546 = pneg %p271
        %p547 = pneg %p268
        %p548 = pneg %p297
        %p549 = pneg %p294
        %s550 = sand.u32 %s284, 1
        %s551 = scalar_lea.sflag [#allocation4], %s550
        %s552 = sand.u32 %s284, 1
        %s553 = smul.addr %s552, 16
        %s554 = scalar_lea.vmem [#allocation19], %s553
        %v556 = vld [vmem:[%s472] sm:$0xff]
        %v557 = vld [vmem:[%s472 + $0x8] sm:$0xff]
        %v558 = vld [vmem:[%s472 + $0x10] sm:$0xff]
        %v559 = vld [vmem:[%s472 + $0x18] sm:$0xff]
        %v560 = vld [vmem:[%s480] sm:$0x1]
        %v561 = vlaneseq
        %v562 = vand.u32 %v561, 127
        %vm563 = vcmp.ge.s32.totalorder %v562, 1
        %vm564 = vcmp.lt.s32.totalorder %v562, 30
        %vm565 = vmand %vm563, %vm564
        %v566 = vsel %vm565, 1, 0
        %v567 = vcvt.s32.f32 %v566
        %vm568 = vcmp.ge.s32.totalorder %v562, 3
        %vm569 = vcmp.lt.s32.totalorder %v562, 29
        %vm570 = vmand %vm568, %vm569
        %v571 = vsel %vm570, 1, 0
        %v572 = vcvt.s32.f32 %v571
        %vm573 = vcmp.ge.s32.totalorder %v562, 6
        %vm574 = vcmp.lt.s32.totalorder %v562, 26
        %vm575 = vmand %vm573, %vm574
        %v576 = vsel %vm575, 1, 0
        %v577 = vcvt.s32.f32 %v576
        %v578 = vld [vmem:[#allocation7] sm:$0xf]
        %v579 = vld [vmem:[#allocation7 + $0x4] sm:$0xf]
        %v580 = vld [vmem:[#allocation7 + $0x8] sm:$0xf]
        %v581 = vld [vmem:[#allocation7 + $0xc] sm:$0xf]
        %v582 = vpack.c.bf16 %v557, %v556
        %v583 = vpack.c.bf16 %v559, %v558
        %v584 = vld [vmem:[#allocation8] sm:$0xff]
        %v585 = vld [vmem:[#allocation8 + $0x8] sm:$0xff]
        %v586 = vld [vmem:[#allocation8 + $0x10] sm:$0xff]
        %v587 = vld [vmem:[#allocation8 + $0x18] sm:$0xff]
        %589 = vset.pattern.permute.xlu0 0
        %590 = vperm.xlu0 %589, %v584
        %v591 = vpop.permute.xlu0 %590
        %594 = vset.pattern.permute.xlu0 0
        %595 = vperm.xlu0 %594, %v585
        %v596 = vpop.permute.xlu0 %595
        %599 = vset.pattern.permute.xlu0 0
        %600 = vperm.xlu0 %599, %v586
        %v601 = vpop.permute.xlu0 %600
        %604 = vset.pattern.permute.xlu0 0
        %605 = vperm.xlu0 %604, %v587
        %v606 = vpop.permute.xlu0 %605
        %v612 = vunpack.c.l.b16 %v578
        %v613 = vunpack.c.l.b16 %v579
        %v614 = vunpack.c.l.b16 %v580
        %v615 = vunpack.c.l.b16 %v581
        %v616 = vpack.c.b16 %v613, %v612
        %v617 = vpack.c.b16 %v615, %v614
        %vm618 = vcmask 261120
        %v620 = vsel %vm618, %v616, 0
        %v623 = vsel %vm618, %v617, 0
        %625 = vmatprep.subr.bf16.mxu0 0
        %626 = vmatpush1.bf16.msra.mxu0 0
        %627 = vmatprep.subr.bf16.mxu0 0
        %628 = vmatpush1.bf16.msra.mxu0 0
        %629 = vmatprep.subr.bf16.mxu0 0
        %630 = vmatpush1.bf16.msra.mxu0 0
        %631 = vmatprep.subr.bf16.mxu0 0
        %632 = vmatpush1.bf16.msra.mxu0 0
        %633 = vmatprep.subr.bf16.mxu0 0
        %634 = vmatpush1.bf16.msra.mxu0 0
        %635 = vmatprep.subr.bf16.mxu0 0
        %636 = vmatpush1.bf16.msra.mxu0 0
        %637 = vmatprep.subr.bf16.mxu0 0
        %638 = vmatpush1.bf16.msra.mxu0 %v583
        %639 = vmatprep.subr.bf16.mxu0 0
        %640 = vmatpush1.bf16.msra.mxu0 %v582
        %641 = vmatprep.subr.bf16.mxu0 0
        %642 = vmatpush2.bf16.msra.mxu0 0
        %643 = vmatprep.subr.bf16.mxu0 0
        %644 = vmatpush2.bf16.msra.mxu0 0
        %645 = vmatprep.subr.bf16.mxu0 0
        %646 = vmatpush2.bf16.msra.mxu0 0
        %647 = vmatprep.subr.bf16.mxu0 0
        %648 = vmatpush2.bf16.msra.mxu0 0
        %649 = vmatprep.subr.bf16.mxu0 0
        %650 = vmatpush2.bf16.msra.mxu0 0
        %651 = vmatprep.subr.bf16.mxu0 0
        %652 = vmatpush2.bf16.msra.mxu0 0
        %653 = vmatprep.subr.bf16.mxu0 0
        %654 = vmatpush2.bf16.msra.mxu0 0
        %655 = vmatprep.subr.bf16.mxu0 0
        %656 = vmatpush2.bf16.msra.mxu0 0
        %657 = vmatprep.mubr.bf16.mxu0 0
        %658 = vmatmul.mubr.bf16.gmra.mxu0 %v620
        %v659 = vpop.f32.mrf.mxu0
        %v660 = vadd.f32 %v591, %v659
        %v661 = vpop.f32.mrf.mxu0
        %v662 = vpop.f32.mrf.mxu0
        %v663 = vadd.f32 %v596, %v662
        %v664 = vpop.f32.mrf.mxu0
        %665 = vmatprep.mubr.bf16.mxu0 0
        %666 = vmatmul.mubr.bf16.gmra.mxu0 %v623
        %v667 = vpop.f32.mrf.mxu0
        %v668 = vadd.f32 %v601, %v667
        %v669 = vpop.f32.mrf.mxu0
        %v670 = vpop.f32.mrf.mxu0
        %v671 = vadd.f32 %v606, %v670
        %v672 = vpop.f32.mrf.mxu0
        %673 = vdwg.mxu0
        %v674 = vmax.f32 %v660, 0.0
        %v675 = vmax.f32 %v663, 0.0
        %v676 = vmax.f32 %v668, 0.0
        %v677 = vmax.f32 %v671, 0.0
        %v679 = vlaneseq
        %v680 = vshrl.u32 %v679, 7
        %v681 = vsub.s32 0, %v680
        %v682 = vrot.slane %v560, %v681
        %v684 = vmul.f32 %v674, %v682
        %v685 = vmul.f32 %v675, %v682
        %v686 = vmul.f32 %v676, %v682
        %v687 = vmul.f32 %v677, %v682
        loop: start=0, step=1, limit=4
        $region105: #{_lambda_.1} parent=63 // loop_pre_header
          _
        $region106: #{_lambda_.1} parent=63 // loop_header
          %s689 = sphi 0, %s693
          %p690 = scmp.ge.s32.totalorder %s689, 4
          %v694 = vphi %v684, %v1799
          %v695 = vphi %v685, %v1800
          %v696 = vphi %v686, %v1801
          %v697 = vphi %v687, %v1802
        $region107: #{_lambda_.1} parent=63 // loop_header_branch
          %692 = sbr.rel (%p690) target = $region111
        $region108: #{_lambda_.1} parent=63 // loop_body
          %s698 = smul.u32 %s689, 6
          %v699 = vpack.c.bf16 %v695, %v694
          %v700 = vpack.c.bf16 %v697, %v696
          %703 = vrot.lane.b32.xlu0 %v699, 1
          %v704 = vpop.permute.xlu0 %703
          %705 = vrot.lane.b32.xlu0 %v700, 1
          %v706 = vpop.permute.xlu0 %705
          %vm707 = vcmask 7168
          %v710 = vsel %vm707, 0, %v704
          %v712 = vsel %vm707, 0, %v706
          %vm713 = vcmask 269312
          %v714 = vsel %vm713, %v710, 0
          %v716 = vsel %vm713, %v712, 0
          %720 = vrot.lane.b32.xlu0 %v714, 127
          %v721 = vpop.permute.xlu0 %720
          %722 = vrot.lane.b32.xlu0 %v716, 127
          %v723 = vpop.permute.xlu0 %722
          %726 = vrot.lane.b32.xlu0 %v714, 126
          %v727 = vpop.permute.xlu0 %726
          %728 = vrot.lane.b32.xlu0 %v716, 126
          %v729 = vpop.permute.xlu0 %728
          %732 = vrot.lane.b32.xlu0 %v714, 125
          %v733 = vpop.permute.xlu0 %732
          %734 = vrot.lane.b32.xlu0 %v716, 125
          %v735 = vpop.permute.xlu0 %734
          %s738 = smul.u32 %s698, 4
          %s739 = smul.addr %s738, 4
          %s740 = scalar_lea.vmem [#allocation10], %s739
          %v741 = vld [vmem:[%s740] sm:$0xf]
          %v742 = vld [vmem:[%s740 + $0x4] sm:$0xf]
          %v743 = vld [vmem:[%s740 + $0x8] sm:$0xf]
          %v744 = vld [vmem:[%s740 + $0xc] sm:$0xf]
          %s745 = smul.u32 %s698, 32
          %s746 = scalar_lea.vmem [#allocation11], %s745
          %v747 = vld [vmem:[%s746] sm:$0xff]
          %v748 = vld [vmem:[%s746 + $0x8] sm:$0xff]
          %v749 = vld [vmem:[%s746 + $0x10] sm:$0xff]
          %v750 = vld [vmem:[%s746 + $0x18] sm:$0xff]
          %752 = vset.pattern.permute.xlu0 0
          %753 = vperm.xlu0 %752, %v747
          %v754 = vpop.permute.xlu0 %753
          %757 = vset.pattern.permute.xlu0 0
          %758 = vperm.xlu0 %757, %v748
          %v759 = vpop.permute.xlu0 %758
          %762 = vset.pattern.permute.xlu0 0
          %763 = vperm.xlu0 %762, %v749
          %v764 = vpop.permute.xlu0 %763
          %767 = vset.pattern.permute.xlu0 0
          %768 = vperm.xlu0 %767, %v750
          %v769 = vpop.permute.xlu0 %768
          %v775 = vunpack.c.l.b16 %v741
          %v776 = vunpack.c.l.b16 %v742
          %v777 = vunpack.c.l.b16 %v743
          %v778 = vunpack.c.l.b16 %v744
          %v779 = vpack.c.b16 %v776, %v775
          %v780 = vpack.c.b16 %v778, %v777
          %783 = vmatprep.subr.bf16.mxu0 0
          %784 = vmatpush1.bf16.msra.mxu0 %v735
          %785 = vmatprep.subr.bf16.mxu0 0
          %786 = vmatpush1.bf16.msra.mxu0 %v733
          %787 = vmatprep.subr.bf16.mxu0 0
          %788 = vmatpush1.bf16.msra.mxu0 %v729
          %789 = vmatprep.subr.bf16.mxu0 0
          %790 = vmatpush1.bf16.msra.mxu0 %v727
          %791 = vmatprep.subr.bf16.mxu0 0
          %792 = vmatpush1.bf16.msra.mxu0 %v723
          %793 = vmatprep.subr.bf16.mxu0 0
          %794 = vmatpush1.bf16.msra.mxu0 %v721
          %795 = vmatprep.subr.bf16.mxu0 0
          %796 = vmatpush1.bf16.msra.mxu0 %v716
          %797 = vmatprep.subr.bf16.mxu0 0
          %798 = vmatpush1.bf16.msra.mxu0 %v714
          %799 = vmatprep.subr.bf16.mxu0 0
          %800 = vmatpush2.bf16.msra.mxu0 0
          %801 = vmatprep.subr.bf16.mxu0 0
          %802 = vmatpush2.bf16.msra.mxu0 0
          %803 = vmatprep.subr.bf16.mxu0 0
          %804 = vmatpush2.bf16.msra.mxu0 0
          %805 = vmatprep.subr.bf16.mxu0 0
          %806 = vmatpush2.bf16.msra.mxu0 0
          %807 = vmatprep.subr.bf16.mxu0 0
          %808 = vmatpush2.bf16.msra.mxu0 0
          %809 = vmatprep.subr.bf16.mxu0 0
          %810 = vmatpush2.bf16.msra.mxu0 0
          %811 = vmatprep.subr.bf16.mxu0 0
          %812 = vmatpush2.bf16.msra.mxu0 0
          %813 = vmatprep.subr.bf16.mxu0 0
          %814 = vmatpush2.bf16.msra.mxu0 0
          %815 = vmatprep.mubr.bf16.mxu0 0
          %816 = vmatmul.mubr.bf16.gmra.mxu0 %v779
          %v817 = vpop.f32.mrf.mxu0
          %v818 = vadd.f32 %v754, %v817
          %v819 = vpop.f32.mrf.mxu0
          %v820 = vpop.f32.mrf.mxu0
          %v821 = vadd.f32 %v759, %v820
          %v822 = vpop.f32.mrf.mxu0
          %823 = vmatprep.mubr.bf16.mxu0 0
          %824 = vmatmul.mubr.bf16.gmra.mxu0 %v780
          %v825 = vpop.f32.mrf.mxu0
          %v826 = vadd.f32 %v764, %v825
          %v827 = vpop.f32.mrf.mxu0
          %v828 = vpop.f32.mrf.mxu0
          %v829 = vadd.f32 %v769, %v828
          %v830 = vpop.f32.mrf.mxu0
          %831 = vdwg.mxu0
          %v832 = vmul.f32 %v818, %v567
          %v833 = vmul.f32 %v821, %v567
          %v834 = vmul.f32 %v826, %v567
          %v835 = vmul.f32 %v829, %v567
          %v836 = vmax.f32 %v832, 0.0
          %v837 = vmax.f32 %v833, 0.0
          %v838 = vmax.f32 %v834, 0.0
          %v839 = vmax.f32 %v835, 0.0
          %840 = vset.pattern.permute.xlu0 1
          %841 = vperm.xlu0 %840, %v747
          %v842 = vpop.permute.xlu0 %841
          %844 = vset.pattern.permute.xlu0 1
          %845 = vperm.xlu0 %844, %v748
          %v846 = vpop.permute.xlu0 %845
          %848 = vset.pattern.permute.xlu0 1
          %849 = vperm.xlu0 %848, %v749
          %v850 = vpop.permute.xlu0 %849
          %852 = vset.pattern.permute.xlu0 1
          %853 = vperm.xlu0 %852, %v750
          %v854 = vpop.permute.xlu0 %853
          %v856 = vmul.f32 %v836, %v842
          %v857 = vmul.f32 %v837, %v846
          %v858 = vmul.f32 %v838, %v850
          %v859 = vmul.f32 %v839, %v854
          %860 = vset.pattern.permute.xlu0 2
          %861 = vperm.xlu0 %860, %v747
          %v862 = vpop.permute.xlu0 %861
          %864 = vset.pattern.permute.xlu0 2
          %865 = vperm.xlu0 %864, %v748
          %v866 = vpop.permute.xlu0 %865
          %868 = vset.pattern.permute.xlu0 2
          %869 = vperm.xlu0 %868, %v749
          %v870 = vpop.permute.xlu0 %869
          %872 = vset.pattern.permute.xlu0 2
          %873 = vperm.xlu0 %872, %v750
          %v874 = vpop.permute.xlu0 %873
          %v876 = vadd.f32 %v856, %v862
          %v877 = vadd.f32 %v857, %v866
          %v878 = vadd.f32 %v858, %v870
          %v879 = vadd.f32 %v859, %v874
          %s880 = sadd.s32 %s698, 1
          %v881 = vpack.c.bf16 %v877, %v876
          %v882 = vpack.c.bf16 %v879, %v878
          %885 = vrot.lane.b32.xlu0 %v881, 1
          %v886 = vpop.permute.xlu0 %885
          %887 = vrot.lane.b32.xlu0 %v882, 1
          %v888 = vpop.permute.xlu0 %887
          %v890 = vsel %vm707, 0, %v886
          %v892 = vsel %vm707, 0, %v888
          %v893 = vsel %vm713, %v890, 0
          %v895 = vsel %vm713, %v892, 0
          %899 = vrot.lane.b32.xlu0 %v893, 127
          %v900 = vpop.permute.xlu0 %899
          %901 = vrot.lane.b32.xlu0 %v895, 127
          %v902 = vpop.permute.xlu0 %901
          %905 = vrot.lane.b32.xlu0 %v893, 126
          %v906 = vpop.permute.xlu0 %905
          %907 = vrot.lane.b32.xlu0 %v895, 126
          %v908 = vpop.permute.xlu0 %907
          %911 = vrot.lane.b32.xlu0 %v893, 125
          %v912 = vpop.permute.xlu0 %911
          %913 = vrot.lane.b32.xlu0 %v895, 125
          %v914 = vpop.permute.xlu0 %913
          %s917 = smul.u32 %s880, 4
          %s918 = smul.addr %s917, 4
          %s919 = scalar_lea.vmem [#allocation10], %s918
          %v920 = vld [vmem:[%s919] sm:$0xf]
          %v921 = vld [vmem:[%s919 + $0x4] sm:$0xf]
          %v922 = vld [vmem:[%s919 + $0x8] sm:$0xf]
          %v923 = vld [vmem:[%s919 + $0xc] sm:$0xf]
          %s924 = smul.u32 %s880, 32
          %s925 = scalar_lea.vmem [#allocation11], %s924
          %v926 = vld [vmem:[%s925] sm:$0xff]
          %v927 = vld [vmem:[%s925 + $0x8] sm:$0xff]
          %v928 = vld [vmem:[%s925 + $0x10] sm:$0xff]
          %v929 = vld [vmem:[%s925 + $0x18] sm:$0xff]
          %931 = vset.pattern.permute.xlu0 0
          %932 = vperm.xlu0 %931, %v926
          %v933 = vpop.permute.xlu0 %932
          %936 = vset.pattern.permute.xlu0 0
          %937 = vperm.xlu0 %936, %v927
          %v938 = vpop.permute.xlu0 %937
          %941 = vset.pattern.permute.xlu0 0
          %942 = vperm.xlu0 %941, %v928
          %v943 = vpop.permute.xlu0 %942
          %946 = vset.pattern.permute.xlu0 0
          %947 = vperm.xlu0 %946, %v929
          %v948 = vpop.permute.xlu0 %947
          %v954 = vunpack.c.l.b16 %v920
          %v955 = vunpack.c.l.b16 %v921
          %v956 = vunpack.c.l.b16 %v922
          %v957 = vunpack.c.l.b16 %v923
          %v958 = vpack.c.b16 %v955, %v954
          %v959 = vpack.c.b16 %v957, %v956
          %962 = vmatprep.subr.bf16.mxu0 0
          %963 = vmatpush1.bf16.msra.mxu0 %v914
          %964 = vmatprep.subr.bf16.mxu0 0
          %965 = vmatpush1.bf16.msra.mxu0 %v912
          %966 = vmatprep.subr.bf16.mxu0 0
          %967 = vmatpush1.bf16.msra.mxu0 %v908
          %968 = vmatprep.subr.bf16.mxu0 0
          %969 = vmatpush1.bf16.msra.mxu0 %v906
          %970 = vmatprep.subr.bf16.mxu0 0
          %971 = vmatpush1.bf16.msra.mxu0 %v902
          %972 = vmatprep.subr.bf16.mxu0 0
          %973 = vmatpush1.bf16.msra.mxu0 %v900
          %974 = vmatprep.subr.bf16.mxu0 0
          %975 = vmatpush1.bf16.msra.mxu0 %v895
          %976 = vmatprep.subr.bf16.mxu0 0
          %977 = vmatpush1.bf16.msra.mxu0 %v893
          %978 = vmatprep.subr.bf16.mxu0 0
          %979 = vmatpush2.bf16.msra.mxu0 0
          %980 = vmatprep.subr.bf16.mxu0 0
          %981 = vmatpush2.bf16.msra.mxu0 0
          %982 = vmatprep.subr.bf16.mxu0 0
          %983 = vmatpush2.bf16.msra.mxu0 0
          %984 = vmatprep.subr.bf16.mxu0 0
          %985 = vmatpush2.bf16.msra.mxu0 0
          %986 = vmatprep.subr.bf16.mxu0 0
          %987 = vmatpush2.bf16.msra.mxu0 0
          %988 = vmatprep.subr.bf16.mxu0 0
          %989 = vmatpush2.bf16.msra.mxu0 0
          %990 = vmatprep.subr.bf16.mxu0 0
          %991 = vmatpush2.bf16.msra.mxu0 0
          %992 = vmatprep.subr.bf16.mxu0 0
          %993 = vmatpush2.bf16.msra.mxu0 0
          %994 = vmatprep.mubr.bf16.mxu0 0
          %995 = vmatmul.mubr.bf16.gmra.mxu0 %v958
          %v996 = vpop.f32.mrf.mxu0
          %v997 = vadd.f32 %v933, %v996
          %v998 = vpop.f32.mrf.mxu0
          %v999 = vpop.f32.mrf.mxu0
          %v1000 = vadd.f32 %v938, %v999
          %v1001 = vpop.f32.mrf.mxu0
          %1002 = vmatprep.mubr.bf16.mxu0 0
          %1003 = vmatmul.mubr.bf16.gmra.mxu0 %v959
          %v1004 = vpop.f32.mrf.mxu0
          %v1005 = vadd.f32 %v943, %v1004
          %v1006 = vpop.f32.mrf.mxu0
          %v1007 = vpop.f32.mrf.mxu0
          %v1008 = vadd.f32 %v948, %v1007
          %v1009 = vpop.f32.mrf.mxu0
          %1010 = vdwg.mxu0
          %v1011 = vmul.f32 %v997, %v567
          %v1012 = vmul.f32 %v1000, %v567
          %v1013 = vmul.f32 %v1005, %v567
          %v1014 = vmul.f32 %v1008, %v567
          %v1015 = vmax.f32 %v1011, 0.0
          %v1016 = vmax.f32 %v1012, 0.0
          %v1017 = vmax.f32 %v1013, 0.0
          %v1018 = vmax.f32 %v1014, 0.0
          %1019 = vset.pattern.permute.xlu0 1
          %1020 = vperm.xlu0 %1019, %v926
          %v1021 = vpop.permute.xlu0 %1020
          %1023 = vset.pattern.permute.xlu0 1
          %1024 = vperm.xlu0 %1023, %v927
          %v1025 = vpop.permute.xlu0 %1024
          %1027 = vset.pattern.permute.xlu0 1
          %1028 = vperm.xlu0 %1027, %v928
          %v1029 = vpop.permute.xlu0 %1028
          %1031 = vset.pattern.permute.xlu0 1
          %1032 = vperm.xlu0 %1031, %v929
          %v1033 = vpop.permute.xlu0 %1032
          %v1035 = vmul.f32 %v1015, %v1021
          %v1036 = vmul.f32 %v1016, %v1025
          %v1037 = vmul.f32 %v1017, %v1029
          %v1038 = vmul.f32 %v1018, %v1033
          %1039 = vset.pattern.permute.xlu0 2
          %1040 = vperm.xlu0 %1039, %v926
          %v1041 = vpop.permute.xlu0 %1040
          %1043 = vset.pattern.permute.xlu0 2
          %1044 = vperm.xlu0 %1043, %v927
          %v1045 = vpop.permute.xlu0 %1044
          %1047 = vset.pattern.permute.xlu0 2
          %1048 = vperm.xlu0 %1047, %v928
          %v1049 = vpop.permute.xlu0 %1048
          %1051 = vset.pattern.permute.xlu0 2
          %1052 = vperm.xlu0 %1051, %v929
          %v1053 = vpop.permute.xlu0 %1052
          %v1055 = vadd.f32 %v1035, %v1041
          %v1056 = vadd.f32 %v1036, %v1045
          %v1057 = vadd.f32 %v1037, %v1049
          %v1058 = vadd.f32 %v1038, %v1053
          %v1059 = vadd.f32 %v1055, %v694
          %v1060 = vadd.f32 %v1056, %v695
          %v1061 = vadd.f32 %v1057, %v696
          %v1062 = vadd.f32 %v1058, %v697
          %v1063 = vmul.f32 %v1059, %v682
          %v1064 = vmul.f32 %v1060, %v682
          %v1065 = vmul.f32 %v1061, %v682
          %v1066 = vmul.f32 %v1062, %v682
          %s1067 = sadd.s32 %s698, 2
          %v1068 = vpack.c.bf16 %v1064, %v1063
          %v1069 = vpack.c.bf16 %v1066, %v1065
          %1072 = vrot.lane.b32.xlu0 %v1068, 3
          %v1073 = vpop.permute.xlu0 %1072
          %1074 = vrot.lane.b32.xlu0 %v1069, 3
          %v1075 = vpop.permute.xlu0 %1074
          %vm1076 = vcmask 23552
          %v1078 = vsel %vm1076, 0, %v1073
          %v1080 = vsel %vm1076, 0, %v1075
          %vm1081 = vcmask 285696
          %v1082 = vsel %vm1081, %v1078, 0
          %v1084 = vsel %vm1081, %v1080, 0
          %1088 = vrot.lane.b32.xlu0 %v1082, 126
          %v1089 = vpop.permute.xlu0 %1088
          %1090 = vrot.lane.b32.xlu0 %v1084, 126
          %v1091 = vpop.permute.xlu0 %1090
          %1094 = vrot.lane.b32.xlu0 %v1082, 124
          %v1095 = vpop.permute.xlu0 %1094
          %1096 = vrot.lane.b32.xlu0 %v1084, 124
          %v1097 = vpop.permute.xlu0 %1096
          %1100 = vrot.lane.b32.xlu0 %v1082, 122
          %v1101 = vpop.permute.xlu0 %1100
          %1102 = vrot.lane.b32.xlu0 %v1084, 122
          %v1103 = vpop.permute.xlu0 %1102
          %s1106 = smul.u32 %s1067, 4
          %s1107 = smul.addr %s1106, 4
          %s1108 = scalar_lea.vmem [#allocation10], %s1107
          %v1109 = vld [vmem:[%s1108] sm:$0xf]
          %v1110 = vld [vmem:[%s1108 + $0x4] sm:$0xf]
          %v1111 = vld [vmem:[%s1108 + $0x8] sm:$0xf]
          %v1112 = vld [vmem:[%s1108 + $0xc] sm:$0xf]
          %s1113 = smul.u32 %s1067, 32
          %s1114 = scalar_lea.vmem [#allocation11], %s1113
          %v1115 = vld [vmem:[%s1114] sm:$0xff]
          %v1116 = vld [vmem:[%s1114 + $0x8] sm:$0xff]
          %v1117 = vld [vmem:[%s1114 + $0x10] sm:$0xff]
          %v1118 = vld [vmem:[%s1114 + $0x18] sm:$0xff]
          %1120 = vset.pattern.permute.xlu0 0
          %1121 = vperm.xlu0 %1120, %v1115
          %v1122 = vpop.permute.xlu0 %1121
          %1125 = vset.pattern.permute.xlu0 0
          %1126 = vperm.xlu0 %1125, %v1116
          %v1127 = vpop.permute.xlu0 %1126
          %1130 = vset.pattern.permute.xlu0 0
          %1131 = vperm.xlu0 %1130, %v1117
          %v1132 = vpop.permute.xlu0 %1131
          %1135 = vset.pattern.permute.xlu0 0
          %1136 = vperm.xlu0 %1135, %v1118
          %v1137 = vpop.permute.xlu0 %1136
          %v1143 = vunpack.c.l.b16 %v1109
          %v1144 = vunpack.c.l.b16 %v1110
          %v1145 = vunpack.c.l.b16 %v1111
          %v1146 = vunpack.c.l.b16 %v1112
          %v1147 = vpack.c.b16 %v1144, %v1143
          %v1148 = vpack.c.b16 %v1146, %v1145
          %1151 = vmatprep.subr.bf16.mxu0 0
          %1152 = vmatpush1.bf16.msra.mxu0 %v1103
          %1153 = vmatprep.subr.bf16.mxu0 0
          %1154 = vmatpush1.bf16.msra.mxu0 %v1101
          %1155 = vmatprep.subr.bf16.mxu0 0
          %1156 = vmatpush1.bf16.msra.mxu0 %v1097
          %1157 = vmatprep.subr.bf16.mxu0 0
          %1158 = vmatpush1.bf16.msra.mxu0 %v1095
          %1159 = vmatprep.subr.bf16.mxu0 0
          %1160 = vmatpush1.bf16.msra.mxu0 %v1091
          %1161 = vmatprep.subr.bf16.mxu0 0
          %1162 = vmatpush1.bf16.msra.mxu0 %v1089
          %1163 = vmatprep.subr.bf16.mxu0 0
          %1164 = vmatpush1.bf16.msra.mxu0 %v1084
          %1165 = vmatprep.subr.bf16.mxu0 0
          %1166 = vmatpush1.bf16.msra.mxu0 %v1082
          %1167 = vmatprep.subr.bf16.mxu0 0
          %1168 = vmatpush2.bf16.msra.mxu0 0
          %1169 = vmatprep.subr.bf16.mxu0 0
          %1170 = vmatpush2.bf16.msra.mxu0 0
          %1171 = vmatprep.subr.bf16.mxu0 0
          %1172 = vmatpush2.bf16.msra.mxu0 0
          %1173 = vmatprep.subr.bf16.mxu0 0
          %1174 = vmatpush2.bf16.msra.mxu0 0
          %1175 = vmatprep.subr.bf16.mxu0 0
          %1176 = vmatpush2.bf16.msra.mxu0 0
          %1177 = vmatprep.subr.bf16.mxu0 0
          %1178 = vmatpush2.bf16.msra.mxu0 0
          %1179 = vmatprep.subr.bf16.mxu0 0
          %1180 = vmatpush2.bf16.msra.mxu0 0
          %1181 = vmatprep.subr.bf16.mxu0 0
          %1182 = vmatpush2.bf16.msra.mxu0 0
          %1183 = vmatprep.mubr.bf16.mxu0 0
          %1184 = vmatmul.mubr.bf16.gmra.mxu0 %v1147
          %v1185 = vpop.f32.mrf.mxu0
          %v1186 = vadd.f32 %v1122, %v1185
          %v1187 = vpop.f32.mrf.mxu0
          %v1188 = vpop.f32.mrf.mxu0
          %v1189 = vadd.f32 %v1127, %v1188
          %v1190 = vpop.f32.mrf.mxu0
          %1191 = vmatprep.mubr.bf16.mxu0 0
          %1192 = vmatmul.mubr.bf16.gmra.mxu0 %v1148
          %v1193 = vpop.f32.mrf.mxu0
          %v1194 = vadd.f32 %v1132, %v1193
          %v1195 = vpop.f32.mrf.mxu0
          %v1196 = vpop.f32.mrf.mxu0
          %v1197 = vadd.f32 %v1137, %v1196
          %v1198 = vpop.f32.mrf.mxu0
          %1199 = vdwg.mxu0
          %v1200 = vmul.f32 %v1186, %v572
          %v1201 = vmul.f32 %v1189, %v572
          %v1202 = vmul.f32 %v1194, %v572
          %v1203 = vmul.f32 %v1197, %v572
          %v1204 = vmax.f32 %v1200, 0.0
          %v1205 = vmax.f32 %v1201, 0.0
          %v1206 = vmax.f32 %v1202, 0.0
          %v1207 = vmax.f32 %v1203, 0.0
          %1208 = vset.pattern.permute.xlu0 1
          %1209 = vperm.xlu0 %1208, %v1115
          %v1210 = vpop.permute.xlu0 %1209
          %1212 = vset.pattern.permute.xlu0 1
          %1213 = vperm.xlu0 %1212, %v1116
          %v1214 = vpop.permute.xlu0 %1213
          %1216 = vset.pattern.permute.xlu0 1
          %1217 = vperm.xlu0 %1216, %v1117
          %v1218 = vpop.permute.xlu0 %1217
          %1220 = vset.pattern.permute.xlu0 1
          %1221 = vperm.xlu0 %1220, %v1118
          %v1222 = vpop.permute.xlu0 %1221
          %v1224 = vmul.f32 %v1204, %v1210
          %v1225 = vmul.f32 %v1205, %v1214
          %v1226 = vmul.f32 %v1206, %v1218
          %v1227 = vmul.f32 %v1207, %v1222
          %1228 = vset.pattern.permute.xlu0 2
          %1229 = vperm.xlu0 %1228, %v1115
          %v1230 = vpop.permute.xlu0 %1229
          %1232 = vset.pattern.permute.xlu0 2
          %1233 = vperm.xlu0 %1232, %v1116
          %v1234 = vpop.permute.xlu0 %1233
          %1236 = vset.pattern.permute.xlu0 2
          %1237 = vperm.xlu0 %1236, %v1117
          %v1238 = vpop.permute.xlu0 %1237
          %1240 = vset.pattern.permute.xlu0 2
          %1241 = vperm.xlu0 %1240, %v1118
          %v1242 = vpop.permute.xlu0 %1241
          %v1244 = vadd.f32 %v1224, %v1230
          %v1245 = vadd.f32 %v1225, %v1234
          %v1246 = vadd.f32 %v1226, %v1238
          %v1247 = vadd.f32 %v1227, %v1242
          %s1248 = sadd.s32 %s698, 3
          %v1249 = vpack.c.bf16 %v1245, %v1244
          %v1250 = vpack.c.bf16 %v1247, %v1246
          %1253 = vrot.lane.b32.xlu0 %v1249, 3
          %v1254 = vpop.permute.xlu0 %1253
          %1255 = vrot.lane.b32.xlu0 %v1250, 3
          %v1256 = vpop.permute.xlu0 %1255
          %v1258 = vsel %vm1076, 0, %v1254
          %v1260 = vsel %vm1076, 0, %v1256
          %v1261 = vsel %vm1081, %v1258, 0
          %v1263 = vsel %vm1081, %v1260, 0
          %1267 = vrot.lane.b32.xlu0 %v1261, 126
          %v1268 = vpop.permute.xlu0 %1267
          %1269 = vrot.lane.b32.xlu0 %v1263, 126
          %v1270 = vpop.permute.xlu0 %1269
          %1273 = vrot.lane.b32.xlu0 %v1261, 124
          %v1274 = vpop.permute.xlu0 %1273
          %1275 = vrot.lane.b32.xlu0 %v1263, 124
          %v1276 = vpop.permute.xlu0 %1275
          %1279 = vrot.lane.b32.xlu0 %v1261, 122
          %v1280 = vpop.permute.xlu0 %1279
          %1281 = vrot.lane.b32.xlu0 %v1263, 122
          %v1282 = vpop.permute.xlu0 %1281
          %s1285 = smul.u32 %s1248, 4
          %s1286 = smul.addr %s1285, 4
          %s1287 = scalar_lea.vmem [#allocation10], %s1286
          %v1288 = vld [vmem:[%s1287] sm:$0xf]
          %v1289 = vld [vmem:[%s1287 + $0x4] sm:$0xf]
          %v1290 = vld [vmem:[%s1287 + $0x8] sm:$0xf]
          %v1291 = vld [vmem:[%s1287 + $0xc] sm:$0xf]
          %s1292 = smul.u32 %s1248, 32
          %s1293 = scalar_lea.vmem [#allocation11], %s1292
          %v1294 = vld [vmem:[%s1293] sm:$0xff]
          %v1295 = vld [vmem:[%s1293 + $0x8] sm:$0xff]
          %v1296 = vld [vmem:[%s1293 + $0x10] sm:$0xff]
          %v1297 = vld [vmem:[%s1293 + $0x18] sm:$0xff]
          %1299 = vset.pattern.permute.xlu0 0
          %1300 = vperm.xlu0 %1299, %v1294
          %v1301 = vpop.permute.xlu0 %1300
          %1304 = vset.pattern.permute.xlu0 0
          %1305 = vperm.xlu0 %1304, %v1295
          %v1306 = vpop.permute.xlu0 %1305
          %1309 = vset.pattern.permute.xlu0 0
          %1310 = vperm.xlu0 %1309, %v1296
          %v1311 = vpop.permute.xlu0 %1310
          %1314 = vset.pattern.permute.xlu0 0
          %1315 = vperm.xlu0 %1314, %v1297
          %v1316 = vpop.permute.xlu0 %1315
          %v1322 = vunpack.c.l.b16 %v1288
          %v1323 = vunpack.c.l.b16 %v1289
          %v1324 = vunpack.c.l.b16 %v1290
          %v1325 = vunpack.c.l.b16 %v1291
          %v1326 = vpack.c.b16 %v1323, %v1322
          %v1327 = vpack.c.b16 %v1325, %v1324
          %1330 = vmatprep.subr.bf16.mxu0 0
          %1331 = vmatpush1.bf16.msra.mxu0 %v1282
          %1332 = vmatprep.subr.bf16.mxu0 0
          %1333 = vmatpush1.bf16.msra.mxu0 %v1280
          %1334 = vmatprep.subr.bf16.mxu0 0
          %1335 = vmatpush1.bf16.msra.mxu0 %v1276
          %1336 = vmatprep.subr.bf16.mxu0 0
          %1337 = vmatpush1.bf16.msra.mxu0 %v1274
          %1338 = vmatprep.subr.bf16.mxu0 0
          %1339 = vmatpush1.bf16.msra.mxu0 %v1270
          %1340 = vmatprep.subr.bf16.mxu0 0
          %1341 = vmatpush1.bf16.msra.mxu0 %v1268
          %1342 = vmatprep.subr.bf16.mxu0 0
          %1343 = vmatpush1.bf16.msra.mxu0 %v1263
          %1344 = vmatprep.subr.bf16.mxu0 0
          %1345 = vmatpush1.bf16.msra.mxu0 %v1261
          %1346 = vmatprep.subr.bf16.mxu0 0
          %1347 = vmatpush2.bf16.msra.mxu0 0
          %1348 = vmatprep.subr.bf16.mxu0 0
          %1349 = vmatpush2.bf16.msra.mxu0 0
          %1350 = vmatprep.subr.bf16.mxu0 0
          %1351 = vmatpush2.bf16.msra.mxu0 0
          %1352 = vmatprep.subr.bf16.mxu0 0
          %1353 = vmatpush2.bf16.msra.mxu0 0
          %1354 = vmatprep.subr.bf16.mxu0 0
          %1355 = vmatpush2.bf16.msra.mxu0 0
          %1356 = vmatprep.subr.bf16.mxu0 0
          %1357 = vmatpush2.bf16.msra.mxu0 0
          %1358 = vmatprep.subr.bf16.mxu0 0
          %1359 = vmatpush2.bf16.msra.mxu0 0
          %1360 = vmatprep.subr.bf16.mxu0 0
          %1361 = vmatpush2.bf16.msra.mxu0 0
          %1362 = vmatprep.mubr.bf16.mxu0 0
          %1363 = vmatmul.mubr.bf16.gmra.mxu0 %v1326
          %v1364 = vpop.f32.mrf.mxu0
          %v1365 = vadd.f32 %v1301, %v1364
          %v1366 = vpop.f32.mrf.mxu0
          %v1367 = vpop.f32.mrf.mxu0
          %v1368 = vadd.f32 %v1306, %v1367
          %v1369 = vpop.f32.mrf.mxu0
          %1370 = vmatprep.mubr.bf16.mxu0 0
          %1371 = vmatmul.mubr.bf16.gmra.mxu0 %v1327
          %v1372 = vpop.f32.mrf.mxu0
          %v1373 = vadd.f32 %v1311, %v1372
          %v1374 = vpop.f32.mrf.mxu0
          %v1375 = vpop.f32.mrf.mxu0
          %v1376 = vadd.f32 %v1316, %v1375
          %v1377 = vpop.f32.mrf.mxu0
          %1378 = vdwg.mxu0
          %v1379 = vmul.f32 %v1365, %v572
          %v1380 = vmul.f32 %v1368, %v572
          %v1381 = vmul.f32 %v1373, %v572
          %v1382 = vmul.f32 %v1376, %v572
          %v1383 = vmax.f32 %v1379, 0.0
          %v1384 = vmax.f32 %v1380, 0.0
          %v1385 = vmax.f32 %v1381, 0.0
          %v1386 = vmax.f32 %v1382, 0.0
          %1387 = vset.pattern.permute.xlu0 1
          %1388 = vperm.xlu0 %1387, %v1294
          %v1389 = vpop.permute.xlu0 %1388
          %1391 = vset.pattern.permute.xlu0 1
          %1392 = vperm.xlu0 %1391, %v1295
          %v1393 = vpop.permute.xlu0 %1392
          %1395 = vset.pattern.permute.xlu0 1
          %1396 = vperm.xlu0 %1395, %v1296
          %v1397 = vpop.permute.xlu0 %1396
          %1399 = vset.pattern.permute.xlu0 1
          %1400 = vperm.xlu0 %1399, %v1297
          %v1401 = vpop.permute.xlu0 %1400
          %v1403 = vmul.f32 %v1383, %v1389
          %v1404 = vmul.f32 %v1384, %v1393
          %v1405 = vmul.f32 %v1385, %v1397
          %v1406 = vmul.f32 %v1386, %v1401
          %1407 = vset.pattern.permute.xlu0 2
          %1408 = vperm.xlu0 %1407, %v1294
          %v1409 = vpop.permute.xlu0 %1408
          %1411 = vset.pattern.permute.xlu0 2
          %1412 = vperm.xlu0 %1411, %v1295
          %v1413 = vpop.permute.xlu0 %1412
          %1415 = vset.pattern.permute.xlu0 2
          %1416 = vperm.xlu0 %1415, %v1296
          %v1417 = vpop.permute.xlu0 %1416
          %1419 = vset.pattern.permute.xlu0 2
          %1420 = vperm.xlu0 %1419, %v1297
          %v1421 = vpop.permute.xlu0 %1420
          %v1423 = vadd.f32 %v1403, %v1409
          %v1424 = vadd.f32 %v1404, %v1413
          %v1425 = vadd.f32 %v1405, %v1417
          %v1426 = vadd.f32 %v1406, %v1421
          %v1427 = vadd.f32 %v1423, %v1063
          %v1428 = vadd.f32 %v1424, %v1064
          %v1429 = vadd.f32 %v1425, %v1065
          %v1430 = vadd.f32 %v1426, %v1066
          %v1431 = vmul.f32 %v1427, %v682
          %v1432 = vmul.f32 %v1428, %v682
          %v1433 = vmul.f32 %v1429, %v682
          %v1434 = vmul.f32 %v1430, %v682
          %s1435 = sadd.s32 %s698, 4
          %v1436 = vpack.c.bf16 %v1432, %v1431
          %v1437 = vpack.c.bf16 %v1434, %v1433
          %1440 = vrot.lane.b32.xlu0 %v1436, 6
          %v1441 = vpop.permute.xlu0 %1440
          %1442 = vrot.lane.b32.xlu0 %v1437, 6
          %v1443 = vpop.permute.xlu0 %1442
          %vm1444 = vcmask 48128
          %v1446 = vsel %vm1444, 0, %v1441
          %v1448 = vsel %vm1444, 0, %v1443
          %vm1449 = vcmask 310272
          %v1450 = vsel %vm1449, %v1446, 0
          %v1452 = vsel %vm1449, %v1448, 0
          %1456 = vrot.lane.b32.xlu0 %v1450, 124
          %v1457 = vpop.permute.xlu0 %1456
          %1458 = vrot.lane.b32.xlu0 %v1452, 124
          %v1459 = vpop.permute.xlu0 %1458
          %1462 = vrot.lane.b32.xlu0 %v1450, 120
          %v1463 = vpop.permute.xlu0 %1462
          %1464 = vrot.lane.b32.xlu0 %v1452, 120
          %v1465 = vpop.permute.xlu0 %1464
          %1468 = vrot.lane.b32.xlu0 %v1450, 116
          %v1469 = vpop.permute.xlu0 %1468
          %1470 = vrot.lane.b32.xlu0 %v1452, 116
          %v1471 = vpop.permute.xlu0 %1470
          %s1474 = smul.u32 %s1435, 4
          %s1475 = smul.addr %s1474, 4
          %s1476 = scalar_lea.vmem [#allocation10], %s1475
          %v1477 = vld [vmem:[%s1476] sm:$0xf]
          %v1478 = vld [vmem:[%s1476 + $0x4] sm:$0xf]
          %v1479 = vld [vmem:[%s1476 + $0x8] sm:$0xf]
          %v1480 = vld [vmem:[%s1476 + $0xc] sm:$0xf]
          %s1481 = smul.u32 %s1435, 32
          %s1482 = scalar_lea.vmem [#allocation11], %s1481
          %v1483 = vld [vmem:[%s1482] sm:$0xff]
          %v1484 = vld [vmem:[%s1482 + $0x8] sm:$0xff]
          %v1485 = vld [vmem:[%s1482 + $0x10] sm:$0xff]
          %v1486 = vld [vmem:[%s1482 + $0x18] sm:$0xff]
          %1488 = vset.pattern.permute.xlu0 0
          %1489 = vperm.xlu0 %1488, %v1483
          %v1490 = vpop.permute.xlu0 %1489
          %1493 = vset.pattern.permute.xlu0 0
          %1494 = vperm.xlu0 %1493, %v1484
          %v1495 = vpop.permute.xlu0 %1494
          %1498 = vset.pattern.permute.xlu0 0
          %1499 = vperm.xlu0 %1498, %v1485
          %v1500 = vpop.permute.xlu0 %1499
          %1503 = vset.pattern.permute.xlu0 0
          %1504 = vperm.xlu0 %1503, %v1486
          %v1505 = vpop.permute.xlu0 %1504
          %v1511 = vunpack.c.l.b16 %v1477
          %v1512 = vunpack.c.l.b16 %v1478
          %v1513 = vunpack.c.l.b16 %v1479
          %v1514 = vunpack.c.l.b16 %v1480
          %v1515 = vpack.c.b16 %v1512, %v1511
          %v1516 = vpack.c.b16 %v1514, %v1513
          %1519 = vmatprep.subr.bf16.mxu0 0
          %1520 = vmatpush1.bf16.msra.mxu0 %v1471
          %1521 = vmatprep.subr.bf16.mxu0 0
          %1522 = vmatpush1.bf16.msra.mxu0 %v1469
          %1523 = vmatprep.subr.bf16.mxu0 0
          %1524 = vmatpush1.bf16.msra.mxu0 %v1465
          %1525 = vmatprep.subr.bf16.mxu0 0
          %1526 = vmatpush1.bf16.msra.mxu0 %v1463
          %1527 = vmatprep.subr.bf16.mxu0 0
          %1528 = vmatpush1.bf16.msra.mxu0 %v1459
          %1529 = vmatprep.subr.bf16.mxu0 0
          %1530 = vmatpush1.bf16.msra.mxu0 %v1457
          %1531 = vmatprep.subr.bf16.mxu0 0
          %1532 = vmatpush1.bf16.msra.mxu0 %v1452
          %1533 = vmatprep.subr.bf16.mxu0 0
          %1534 = vmatpush1.bf16.msra.mxu0 %v1450
          %1535 = vmatprep.subr.bf16.mxu0 0
          %1536 = vmatpush2.bf16.msra.mxu0 0
          %1537 = vmatprep.subr.bf16.mxu0 0
          %1538 = vmatpush2.bf16.msra.mxu0 0
          %1539 = vmatprep.subr.bf16.mxu0 0
          %1540 = vmatpush2.bf16.msra.mxu0 0
          %1541 = vmatprep.subr.bf16.mxu0 0
          %1542 = vmatpush2.bf16.msra.mxu0 0
          %1543 = vmatprep.subr.bf16.mxu0 0
          %1544 = vmatpush2.bf16.msra.mxu0 0
          %1545 = vmatprep.subr.bf16.mxu0 0
          %1546 = vmatpush2.bf16.msra.mxu0 0
          %1547 = vmatprep.subr.bf16.mxu0 0
          %1548 = vmatpush2.bf16.msra.mxu0 0
          %1549 = vmatprep.subr.bf16.mxu0 0
          %1550 = vmatpush2.bf16.msra.mxu0 0
          %1551 = vmatprep.mubr.bf16.mxu0 0
          %1552 = vmatmul.mubr.bf16.gmra.mxu0 %v1515
          %v1553 = vpop.f32.mrf.mxu0
          %v1554 = vadd.f32 %v1490, %v1553
          %v1555 = vpop.f32.mrf.mxu0
          %v1556 = vpop.f32.mrf.mxu0
          %v1557 = vadd.f32 %v1495, %v1556
          %v1558 = vpop.f32.mrf.mxu0
          %1559 = vmatprep.mubr.bf16.mxu0 0
          %1560 = vmatmul.mubr.bf16.gmra.mxu0 %v1516
          %v1561 = vpop.f32.mrf.mxu0
          %v1562 = vadd.f32 %v1500, %v1561
          %v1563 = vpop.f32.mrf.mxu0
          %v1564 = vpop.f32.mrf.mxu0
          %v1565 = vadd.f32 %v1505, %v1564
          %v1566 = vpop.f32.mrf.mxu0
          %1567 = vdwg.mxu0
          %v1568 = vmul.f32 %v1554, %v577
          %v1569 = vmul.f32 %v1557, %v577
          %v1570 = vmul.f32 %v1562, %v577
          %v1571 = vmul.f32 %v1565, %v577
          %v1572 = vmax.f32 %v1568, 0.0
          %v1573 = vmax.f32 %v1569, 0.0
          %v1574 = vmax.f32 %v1570, 0.0
          %v1575 = vmax.f32 %v1571, 0.0
          %1576 = vset.pattern.permute.xlu0 1
          %1577 = vperm.xlu0 %1576, %v1483
          %v1578 = vpop.permute.xlu0 %1577
          %1580 = vset.pattern.permute.xlu0 1
          %1581 = vperm.xlu0 %1580, %v1484
          %v1582 = vpop.permute.xlu0 %1581
          %1584 = vset.pattern.permute.xlu0 1
          %1585 = vperm.xlu0 %1584, %v1485
          %v1586 = vpop.permute.xlu0 %1585
          %1588 = vset.pattern.permute.xlu0 1
          %1589 = vperm.xlu0 %1588, %v1486
          %v1590 = vpop.permute.xlu0 %1589
          %v1592 = vmul.f32 %v1572, %v1578
          %v1593 = vmul.f32 %v1573, %v1582
          %v1594 = vmul.f32 %v1574, %v1586
          %v1595 = vmul.f32 %v1575, %v1590
          %1596 = vset.pattern.permute.xlu0 2
          %1597 = vperm.xlu0 %1596, %v1483
          %v1598 = vpop.permute.xlu0 %1597
          %1600 = vset.pattern.permute.xlu0 2
          %1601 = vperm.xlu0 %1600, %v1484
          %v1602 = vpop.permute.xlu0 %1601
          %1604 = vset.pattern.permute.xlu0 2
          %1605 = vperm.xlu0 %1604, %v1485
          %v1606 = vpop.permute.xlu0 %1605
          %1608 = vset.pattern.permute.xlu0 2
          %1609 = vperm.xlu0 %1608, %v1486
          %v1610 = vpop.permute.xlu0 %1609
          %v1612 = vadd.f32 %v1592, %v1598
          %v1613 = vadd.f32 %v1593, %v1602
          %v1614 = vadd.f32 %v1594, %v1606
          %v1615 = vadd.f32 %v1595, %v1610
          %s1616 = sadd.s32 %s698, 5
          %v1617 = vpack.c.bf16 %v1613, %v1612
          %v1618 = vpack.c.bf16 %v1615, %v1614
          %1621 = vrot.lane.b32.xlu0 %v1617, 6
          %v1622 = vpop.permute.xlu0 %1621
          %1623 = vrot.lane.b32.xlu0 %v1618, 6
          %v1624 = vpop.permute.xlu0 %1623
          %v1626 = vsel %vm1444, 0, %v1622
          %v1628 = vsel %vm1444, 0, %v1624
          %v1629 = vsel %vm1449, %v1626, 0
          %v1631 = vsel %vm1449, %v1628, 0
          %1635 = vrot.lane.b32.xlu0 %v1629, 124
          %v1636 = vpop.permute.xlu0 %1635
          %1637 = vrot.lane.b32.xlu0 %v1631, 124
          %v1638 = vpop.permute.xlu0 %1637
          %1641 = vrot.lane.b32.xlu0 %v1629, 120
          %v1642 = vpop.permute.xlu0 %1641
          %1643 = vrot.lane.b32.xlu0 %v1631, 120
          %v1644 = vpop.permute.xlu0 %1643
          %1647 = vrot.lane.b32.xlu0 %v1629, 116
          %v1648 = vpop.permute.xlu0 %1647
          %1649 = vrot.lane.b32.xlu0 %v1631, 116
          %v1650 = vpop.permute.xlu0 %1649
          %s1653 = smul.u32 %s1616, 4
          %s1654 = smul.addr %s1653, 4
          %s1655 = scalar_lea.vmem [#allocation10], %s1654
          %v1656 = vld [vmem:[%s1655] sm:$0xf]
          %v1657 = vld [vmem:[%s1655 + $0x4] sm:$0xf]
          %v1658 = vld [vmem:[%s1655 + $0x8] sm:$0xf]
          %v1659 = vld [vmem:[%s1655 + $0xc] sm:$0xf]
          %s1660 = smul.u32 %s1616, 32
          %s1661 = scalar_lea.vmem [#allocation11], %s1660
          %v1662 = vld [vmem:[%s1661] sm:$0xff]
          %v1663 = vld [vmem:[%s1661 + $0x8] sm:$0xff]
          %v1664 = vld [vmem:[%s1661 + $0x10] sm:$0xff]
          %v1665 = vld [vmem:[%s1661 + $0x18] sm:$0xff]
          %1667 = vset.pattern.permute.xlu0 0
          %1668 = vperm.xlu0 %1667, %v1662
          %v1669 = vpop.permute.xlu0 %1668
          %1672 = vset.pattern.permute.xlu0 0
          %1673 = vperm.xlu0 %1672, %v1663
          %v1674 = vpop.permute.xlu0 %1673
          %1677 = vset.pattern.permute.xlu0 0
          %1678 = vperm.xlu0 %1677, %v1664
          %v1679 = vpop.permute.xlu0 %1678
          %1682 = vset.pattern.permute.xlu0 0
          %1683 = vperm.xlu0 %1682, %v1665
          %v1684 = vpop.permute.xlu0 %1683
          %v1690 = vunpack.c.l.b16 %v1656
          %v1691 = vunpack.c.l.b16 %v1657
          %v1692 = vunpack.c.l.b16 %v1658
          %v1693 = vunpack.c.l.b16 %v1659
          %v1694 = vpack.c.b16 %v1691, %v1690
          %v1695 = vpack.c.b16 %v1693, %v1692
          %1698 = vmatprep.subr.bf16.mxu0 0
          %1699 = vmatpush1.bf16.msra.mxu0 %v1650
          %1700 = vmatprep.subr.bf16.mxu0 0
          %1701 = vmatpush1.bf16.msra.mxu0 %v1648
          %1702 = vmatprep.subr.bf16.mxu0 0
          %1703 = vmatpush1.bf16.msra.mxu0 %v1644
          %1704 = vmatprep.subr.bf16.mxu0 0
          %1705 = vmatpush1.bf16.msra.mxu0 %v1642
          %1706 = vmatprep.subr.bf16.mxu0 0
          %1707 = vmatpush1.bf16.msra.mxu0 %v1638
          %1708 = vmatprep.subr.bf16.mxu0 0
          %1709 = vmatpush1.bf16.msra.mxu0 %v1636
          %1710 = vmatprep.subr.bf16.mxu0 0
          %1711 = vmatpush1.bf16.msra.mxu0 %v1631
          %1712 = vmatprep.subr.bf16.mxu0 0
          %1713 = vmatpush1.bf16.msra.mxu0 %v1629
          %1714 = vmatprep.subr.bf16.mxu0 0
          %1715 = vmatpush2.bf16.msra.mxu0 0
          %1716 = vmatprep.subr.bf16.mxu0 0
          %1717 = vmatpush2.bf16.msra.mxu0 0
          %1718 = vmatprep.subr.bf16.mxu0 0
          %1719 = vmatpush2.bf16.msra.mxu0 0
          %1720 = vmatprep.subr.bf16.mxu0 0
          %1721 = vmatpush2.bf16.msra.mxu0 0
          %1722 = vmatprep.subr.bf16.mxu0 0
          %1723 = vmatpush2.bf16.msra.mxu0 0
          %1724 = vmatprep.subr.bf16.mxu0 0
          %1725 = vmatpush2.bf16.msra.mxu0 0
          %1726 = vmatprep.subr.bf16.mxu0 0
          %1727 = vmatpush2.bf16.msra.mxu0 0
          %1728 = vmatprep.subr.bf16.mxu0 0
          %1729 = vmatpush2.bf16.msra.mxu0 0
          %1730 = vmatprep.mubr.bf16.mxu0 0
          %1731 = vmatmul.mubr.bf16.gmra.mxu0 %v1694
          %v1732 = vpop.f32.mrf.mxu0
          %v1733 = vadd.f32 %v1669, %v1732
          %v1734 = vpop.f32.mrf.mxu0
          %v1735 = vpop.f32.mrf.mxu0
          %v1736 = vadd.f32 %v1674, %v1735
          %v1737 = vpop.f32.mrf.mxu0
          %1738 = vmatprep.mubr.bf16.mxu0 0
          %1739 = vmatmul.mubr.bf16.gmra.mxu0 %v1695
          %v1740 = vpop.f32.mrf.mxu0
          %v1741 = vadd.f32 %v1679, %v1740
          %v1742 = vpop.f32.mrf.mxu0
          %v1743 = vpop.f32.mrf.mxu0
          %v1744 = vadd.f32 %v1684, %v1743
          %v1745 = vpop.f32.mrf.mxu0
          %1746 = vdwg.mxu0
          %v1747 = vmul.f32 %v1733, %v577
          %v1748 = vmul.f32 %v1736, %v577
          %v1749 = vmul.f32 %v1741, %v577
          %v1750 = vmul.f32 %v1744, %v577
          %v1751 = vmax.f32 %v1747, 0.0
          %v1752 = vmax.f32 %v1748, 0.0
          %v1753 = vmax.f32 %v1749, 0.0
          %v1754 = vmax.f32 %v1750, 0.0
          %1755 = vset.pattern.permute.xlu0 1
          %1756 = vperm.xlu0 %1755, %v1662
          %v1757 = vpop.permute.xlu0 %1756
          %1759 = vset.pattern.permute.xlu0 1
          %1760 = vperm.xlu0 %1759, %v1663
          %v1761 = vpop.permute.xlu0 %1760
          %1763 = vset.pattern.permute.xlu0 1
          %1764 = vperm.xlu0 %1763, %v1664
          %v1765 = vpop.permute.xlu0 %1764
          %1767 = vset.pattern.permute.xlu0 1
          %1768 = vperm.xlu0 %1767, %v1665
          %v1769 = vpop.permute.xlu0 %1768
          %v1771 = vmul.f32 %v1751, %v1757
          %v1772 = vmul.f32 %v1752, %v1761
          %v1773 = vmul.f32 %v1753, %v1765
          %v1774 = vmul.f32 %v1754, %v1769
          %1775 = vset.pattern.permute.xlu0 2
          %1776 = vperm.xlu0 %1775, %v1662
          %v1777 = vpop.permute.xlu0 %1776
          %1779 = vset.pattern.permute.xlu0 2
          %1780 = vperm.xlu0 %1779, %v1663
          %v1781 = vpop.permute.xlu0 %1780
          %1783 = vset.pattern.permute.xlu0 2
          %1784 = vperm.xlu0 %1783, %v1664
          %v1785 = vpop.permute.xlu0 %1784
          %1787 = vset.pattern.permute.xlu0 2
          %1788 = vperm.xlu0 %1787, %v1665
          %v1789 = vpop.permute.xlu0 %1788
          %v1791 = vadd.f32 %v1771, %v1777
          %v1792 = vadd.f32 %v1772, %v1781
          %v1793 = vadd.f32 %v1773, %v1785
          %v1794 = vadd.f32 %v1774, %v1789
          %v1795 = vadd.f32 %v1791, %v1431
          %v1796 = vadd.f32 %v1792, %v1432
          %v1797 = vadd.f32 %v1793, %v1433
          %v1798 = vadd.f32 %v1794, %v1434
          %v1799 = vmul.f32 %v1795, %v682
          %v1800 = vmul.f32 %v1796, %v682
          %v1801 = vmul.f32 %v1797, %v682
          %v1802 = vmul.f32 %v1798, %v682
        $region109: #{_lambda_.1} parent=63 // loop_footer
          %s693 = sadd.s32 1, %s689
        $region110: #{_lambda_.1} parent=63 // loop_footer_branch
          %688 = sbr.rel target = $region106
        $region111: #{_lambda_.1} parent=63 // loop_exit
          _
        %v1803 = vpack.c.bf16 %v695, %v694
        %v1804 = vpack.c.bf16 %v697, %v696
        %1807 = vrot.lane.b32.xlu0 %v1803, 1
        %v1808 = vpop.permute.xlu0 %1807
        %1809 = vrot.lane.b32.xlu0 %v1804, 1
        %v1810 = vpop.permute.xlu0 %1809
        %vm1811 = vcmask 7168
        %v1814 = vsel %vm1811, 0, %v1808
        %v1816 = vsel %vm1811, 0, %v1810
        %vm1817 = vcmask 269312
        %v1818 = vsel %vm1817, %v1814, 0
        %v1820 = vsel %vm1817, %v1816, 0
        %1824 = vrot.lane.b32.xlu0 %v1818, 127
        %v1825 = vpop.permute.xlu0 %1824
        %1826 = vrot.lane.b32.xlu0 %v1820, 127
        %v1827 = vpop.permute.xlu0 %1826
        %1830 = vrot.lane.b32.xlu0 %v1818, 126
        %v1831 = vpop.permute.xlu0 %1830
        %1832 = vrot.lane.b32.xlu0 %v1820, 126
        %v1833 = vpop.permute.xlu0 %1832
        %1836 = vrot.lane.b32.xlu0 %v1818, 125
        %v1837 = vpop.permute.xlu0 %1836
        %1838 = vrot.lane.b32.xlu0 %v1820, 125
        %v1839 = vpop.permute.xlu0 %1838
        %s1842 = scalar_lea.vmem [#allocation10], 384
        %v1843 = vld [vmem:[%s1842] sm:$0xf]
        %v1844 = vld [vmem:[%s1842 + $0x4] sm:$0xf]
        %v1845 = vld [vmem:[%s1842 + $0x8] sm:$0xf]
        %v1846 = vld [vmem:[%s1842 + $0xc] sm:$0xf]
        %s1847 = scalar_lea.vmem [#allocation11], 768
        %v1848 = vld [vmem:[%s1847] sm:$0xff]
        %v1849 = vld [vmem:[%s1847 + $0x8] sm:$0xff]
        %v1850 = vld [vmem:[%s1847 + $0x10] sm:$0xff]
        %v1851 = vld [vmem:[%s1847 + $0x18] sm:$0xff]
        %1853 = vset.pattern.permute.xlu0 0
        %1854 = vperm.xlu0 %1853, %v1848
        %v1855 = vpop.permute.xlu0 %1854
        %1858 = vset.pattern.permute.xlu0 0
        %1859 = vperm.xlu0 %1858, %v1849
        %v1860 = vpop.permute.xlu0 %1859
        %1863 = vset.pattern.permute.xlu0 0
        %1864 = vperm.xlu0 %1863, %v1850
        %v1865 = vpop.permute.xlu0 %1864
        %1868 = vset.pattern.permute.xlu0 0
        %1869 = vperm.xlu0 %1868, %v1851
        %v1870 = vpop.permute.xlu0 %1869
        %v1876 = vunpack.c.l.b16 %v1843
        %v1877 = vunpack.c.l.b16 %v1844
        %v1878 = vunpack.c.l.b16 %v1845
        %v1879 = vunpack.c.l.b16 %v1846
        %v1880 = vpack.c.b16 %v1877, %v1876
        %v1881 = vpack.c.b16 %v1879, %v1878
        %1884 = vmatprep.subr.bf16.mxu0 0
        %1885 = vmatpush1.bf16.msra.mxu0 %v1839
        %1886 = vmatprep.subr.bf16.mxu0 0
        %1887 = vmatpush1.bf16.msra.mxu0 %v1837
        %1888 = vmatprep.subr.bf16.mxu0 0
        %1889 = vmatpush1.bf16.msra.mxu0 %v1833
        %1890 = vmatprep.subr.bf16.mxu0 0
        %1891 = vmatpush1.bf16.msra.mxu0 %v1831
        %1892 = vmatprep.subr.bf16.mxu0 0
        %1893 = vmatpush1.bf16.msra.mxu0 %v1827
        %1894 = vmatprep.subr.bf16.mxu0 0
        %1895 = vmatpush1.bf16.msra.mxu0 %v1825
        %1896 = vmatprep.subr.bf16.mxu0 0
        %1897 = vmatpush1.bf16.msra.mxu0 %v1820
        %1898 = vmatprep.subr.bf16.mxu0 0
        %1899 = vmatpush1.bf16.msra.mxu0 %v1818
        %1900 = vmatprep.subr.bf16.mxu0 0
        %1901 = vmatpush2.bf16.msra.mxu0 0
        %1902 = vmatprep.subr.bf16.mxu0 0
        %1903 = vmatpush2.bf16.msra.mxu0 0
        %1904 = vmatprep.subr.bf16.mxu0 0
        %1905 = vmatpush2.bf16.msra.mxu0 0
        %1906 = vmatprep.subr.bf16.mxu0 0
        %1907 = vmatpush2.bf16.msra.mxu0 0
        %1908 = vmatprep.subr.bf16.mxu0 0
        %1909 = vmatpush2.bf16.msra.mxu0 0
        %1910 = vmatprep.subr.bf16.mxu0 0
        %1911 = vmatpush2.bf16.msra.mxu0 0
        %1912 = vmatprep.subr.bf16.mxu0 0
        %1913 = vmatpush2.bf16.msra.mxu0 0
        %1914 = vmatprep.subr.bf16.mxu0 0
        %1915 = vmatpush2.bf16.msra.mxu0 0
        %1916 = vmatprep.mubr.bf16.mxu0 0
        %1917 = vmatmul.mubr.bf16.gmra.mxu0 %v1880
        %v1918 = vpop.f32.mrf.mxu0
        %v1919 = vadd.f32 %v1855, %v1918
        %v1920 = vpop.f32.mrf.mxu0
        %v1921 = vpop.f32.mrf.mxu0
        %v1922 = vadd.f32 %v1860, %v1921
        %v1923 = vpop.f32.mrf.mxu0
        %1924 = vmatprep.mubr.bf16.mxu0 0
        %1925 = vmatmul.mubr.bf16.gmra.mxu0 %v1881
        %v1926 = vpop.f32.mrf.mxu0
        %v1927 = vadd.f32 %v1865, %v1926
        %v1928 = vpop.f32.mrf.mxu0
        %v1929 = vpop.f32.mrf.mxu0
        %v1930 = vadd.f32 %v1870, %v1929
        %v1931 = vpop.f32.mrf.mxu0
        %1932 = vdwg.mxu0
        %v1933 = vmul.f32 %v1919, %v567
        %v1934 = vmul.f32 %v1922, %v567
        %v1935 = vmul.f32 %v1927, %v567
        %v1936 = vmul.f32 %v1930, %v567
        %v1937 = vmax.f32 %v1933, 0.0
        %v1938 = vmax.f32 %v1934, 0.0
        %v1939 = vmax.f32 %v1935, 0.0
        %v1940 = vmax.f32 %v1936, 0.0
        %1941 = vset.pattern.permute.xlu0 1
        %1942 = vperm.xlu0 %1941, %v1848
        %v1943 = vpop.permute.xlu0 %1942
        %1945 = vset.pattern.permute.xlu0 1
        %1946 = vperm.xlu0 %1945, %v1849
        %v1947 = vpop.permute.xlu0 %1946
        %1949 = vset.pattern.permute.xlu0 1
        %1950 = vperm.xlu0 %1949, %v1850
        %v1951 = vpop.permute.xlu0 %1950
        %1953 = vset.pattern.permute.xlu0 1
        %1954 = vperm.xlu0 %1953, %v1851
        %v1955 = vpop.permute.xlu0 %1954
        %v1957 = vmul.f32 %v1937, %v1943
        %v1958 = vmul.f32 %v1938, %v1947
        %v1959 = vmul.f32 %v1939, %v1951
        %v1960 = vmul.f32 %v1940, %v1955
        %1961 = vset.pattern.permute.xlu0 2
        %1962 = vperm.xlu0 %1961, %v1848
        %v1963 = vpop.permute.xlu0 %1962
        %1965 = vset.pattern.permute.xlu0 2
        %1966 = vperm.xlu0 %1965, %v1849
        %v1967 = vpop.permute.xlu0 %1966
        %1969 = vset.pattern.permute.xlu0 2
        %1970 = vperm.xlu0 %1969, %v1850
        %v1971 = vpop.permute.xlu0 %1970
        %1973 = vset.pattern.permute.xlu0 2
        %1974 = vperm.xlu0 %1973, %v1851
        %v1975 = vpop.permute.xlu0 %1974
        %v1977 = vadd.f32 %v1957, %v1963
        %v1978 = vadd.f32 %v1958, %v1967
        %v1979 = vadd.f32 %v1959, %v1971
        %v1980 = vadd.f32 %v1960, %v1975
        %v1981 = vpack.c.bf16 %v1978, %v1977
        %v1982 = vpack.c.bf16 %v1980, %v1979
        %1985 = vrot.lane.b32.xlu0 %v1981, 1
        %v1986 = vpop.permute.xlu0 %1985
        %1987 = vrot.lane.b32.xlu0 %v1982, 1
        %v1988 = vpop.permute.xlu0 %1987
        %v1990 = vsel %vm1811, 0, %v1986
        %v1992 = vsel %vm1811, 0, %v1988
        %v1993 = vsel %vm1817, %v1990, 0
        %v1995 = vsel %vm1817, %v1992, 0
        %1999 = vrot.lane.b32.xlu0 %v1993, 127
        %v2000 = vpop.permute.xlu0 %1999
        %2001 = vrot.lane.b32.xlu0 %v1995, 127
        %v2002 = vpop.permute.xlu0 %2001
        %2005 = vrot.lane.b32.xlu0 %v1993, 126
        %v2006 = vpop.permute.xlu0 %2005
        %2007 = vrot.lane.b32.xlu0 %v1995, 126
        %v2008 = vpop.permute.xlu0 %2007
        %2011 = vrot.lane.b32.xlu0 %v1993, 125
        %v2012 = vpop.permute.xlu0 %2011
        %2013 = vrot.lane.b32.xlu0 %v1995, 125
        %v2014 = vpop.permute.xlu0 %2013
        %s2017 = scalar_lea.vmem [#allocation10], 400
        %v2018 = vld [vmem:[%s2017] sm:$0xf]
        %v2019 = vld [vmem:[%s2017 + $0x4] sm:$0xf]
        %v2020 = vld [vmem:[%s2017 + $0x8] sm:$0xf]
        %v2021 = vld [vmem:[%s2017 + $0xc] sm:$0xf]
        %s2022 = scalar_lea.vmem [#allocation11], 800
        %v2023 = vld [vmem:[%s2022] sm:$0xff]
        %v2024 = vld [vmem:[%s2022 + $0x8] sm:$0xff]
        %v2025 = vld [vmem:[%s2022 + $0x10] sm:$0xff]
        %v2026 = vld [vmem:[%s2022 + $0x18] sm:$0xff]
        %2028 = vset.pattern.permute.xlu0 0
        %2029 = vperm.xlu0 %2028, %v2023
        %v2030 = vpop.permute.xlu0 %2029
        %2033 = vset.pattern.permute.xlu0 0
        %2034 = vperm.xlu0 %2033, %v2024
        %v2035 = vpop.permute.xlu0 %2034
        %2038 = vset.pattern.permute.xlu0 0
        %2039 = vperm.xlu0 %2038, %v2025
        %v2040 = vpop.permute.xlu0 %2039
        %2043 = vset.pattern.permute.xlu0 0
        %2044 = vperm.xlu0 %2043, %v2026
        %v2045 = vpop.permute.xlu0 %2044
        %v2051 = vunpack.c.l.b16 %v2018
        %v2052 = vunpack.c.l.b16 %v2019
        %v2053 = vunpack.c.l.b16 %v2020
        %v2054 = vunpack.c.l.b16 %v2021
        %v2055 = vpack.c.b16 %v2052, %v2051
        %v2056 = vpack.c.b16 %v2054, %v2053
        %2059 = vmatprep.subr.bf16.mxu0 0
        %2060 = vmatpush1.bf16.msra.mxu0 %v2014
        %2061 = vmatprep.subr.bf16.mxu0 0
        %2062 = vmatpush1.bf16.msra.mxu0 %v2012
        %2063 = vmatprep.subr.bf16.mxu0 0
        %2064 = vmatpush1.bf16.msra.mxu0 %v2008
        %2065 = vmatprep.subr.bf16.mxu0 0
        %2066 = vmatpush1.bf16.msra.mxu0 %v2006
        %2067 = vmatprep.subr.bf16.mxu0 0
        %2068 = vmatpush1.bf16.msra.mxu0 %v2002
        %2069 = vmatprep.subr.bf16.mxu0 0
        %2070 = vmatpush1.bf16.msra.mxu0 %v2000
        %2071 = vmatprep.subr.bf16.mxu0 0
        %2072 = vmatpush1.bf16.msra.mxu0 %v1995
        %2073 = vmatprep.subr.bf16.mxu0 0
        %2074 = vmatpush1.bf16.msra.mxu0 %v1993
        %2075 = vmatprep.subr.bf16.mxu0 0
        %2076 = vmatpush2.bf16.msra.mxu0 0
        %2077 = vmatprep.subr.bf16.mxu0 0
        %2078 = vmatpush2.bf16.msra.mxu0 0
        %2079 = vmatprep.subr.bf16.mxu0 0
        %2080 = vmatpush2.bf16.msra.mxu0 0
        %2081 = vmatprep.subr.bf16.mxu0 0
        %2082 = vmatpush2.bf16.msra.mxu0 0
        %2083 = vmatprep.subr.bf16.mxu0 0
        %2084 = vmatpush2.bf16.msra.mxu0 0
        %2085 = vmatprep.subr.bf16.mxu0 0
        %2086 = vmatpush2.bf16.msra.mxu0 0
        %2087 = vmatprep.subr.bf16.mxu0 0
        %2088 = vmatpush2.bf16.msra.mxu0 0
        %2089 = vmatprep.subr.bf16.mxu0 0
        %2090 = vmatpush2.bf16.msra.mxu0 0
        %2091 = vmatprep.mubr.bf16.mxu0 0
        %2092 = vmatmul.mubr.bf16.gmra.mxu0 %v2055
        %v2093 = vpop.f32.mrf.mxu0
        %v2094 = vadd.f32 %v2030, %v2093
        %v2095 = vpop.f32.mrf.mxu0
        %v2096 = vpop.f32.mrf.mxu0
        %v2097 = vadd.f32 %v2035, %v2096
        %v2098 = vpop.f32.mrf.mxu0
        %2099 = vmatprep.mubr.bf16.mxu0 0
        %2100 = vmatmul.mubr.bf16.gmra.mxu0 %v2056
        %v2101 = vpop.f32.mrf.mxu0
        %v2102 = vadd.f32 %v2040, %v2101
        %v2103 = vpop.f32.mrf.mxu0
        %v2104 = vpop.f32.mrf.mxu0
        %v2105 = vadd.f32 %v2045, %v2104
        %v2106 = vpop.f32.mrf.mxu0
        %2107 = vdwg.mxu0
        %v2108 = vmul.f32 %v2094, %v567
        %v2109 = vmul.f32 %v2097, %v567
        %v2110 = vmul.f32 %v2102, %v567
        %v2111 = vmul.f32 %v2105, %v567
        %v2112 = vmax.f32 %v2108, 0.0
        %v2113 = vmax.f32 %v2109, 0.0
        %v2114 = vmax.f32 %v2110, 0.0
        %v2115 = vmax.f32 %v2111, 0.0
        %2116 = vset.pattern.permute.xlu0 1
        %2117 = vperm.xlu0 %2116, %v2023
        %v2118 = vpop.permute.xlu0 %2117
        %2120 = vset.pattern.permute.xlu0 1
        %2121 = vperm.xlu0 %2120, %v2024
        %v2122 = vpop.permute.xlu0 %2121
        %2124 = vset.pattern.permute.xlu0 1
        %2125 = vperm.xlu0 %2124, %v2025
        %v2126 = vpop.permute.xlu0 %2125
        %2128 = vset.pattern.permute.xlu0 1
        %2129 = vperm.xlu0 %2128, %v2026
        %v2130 = vpop.permute.xlu0 %2129
        %v2132 = vmul.f32 %v2112, %v2118
        %v2133 = vmul.f32 %v2113, %v2122
        %v2134 = vmul.f32 %v2114, %v2126
        %v2135 = vmul.f32 %v2115, %v2130
        %2136 = vset.pattern.permute.xlu0 2
        %2137 = vperm.xlu0 %2136, %v2023
        %v2138 = vpop.permute.xlu0 %2137
        %2140 = vset.pattern.permute.xlu0 2
        %2141 = vperm.xlu0 %2140, %v2024
        %v2142 = vpop.permute.xlu0 %2141
        %2144 = vset.pattern.permute.xlu0 2
        %2145 = vperm.xlu0 %2144, %v2025
        %v2146 = vpop.permute.xlu0 %2145
        %2148 = vset.pattern.permute.xlu0 2
        %2149 = vperm.xlu0 %2148, %v2026
        %v2150 = vpop.permute.xlu0 %2149
        %v2152 = vadd.f32 %v2132, %v2138
        %v2153 = vadd.f32 %v2133, %v2142
        %v2154 = vadd.f32 %v2134, %v2146
        %v2155 = vadd.f32 %v2135, %v2150
        %v2156 = vadd.f32 %v2152, %v694
        %v2157 = vadd.f32 %v2153, %v695
        %v2158 = vadd.f32 %v2154, %v696
        %v2159 = vadd.f32 %v2155, %v697
        %v2160 = vmul.f32 %v2156, %v682
        %v2161 = vmul.f32 %v2157, %v682
        %v2162 = vmul.f32 %v2158, %v682
        %v2163 = vmul.f32 %v2159, %v682
        %v2164 = vadd.f32 %v2160, %v556
        %v2165 = vadd.f32 %v2161, %v557
        %v2166 = vadd.f32 %v2162, %v558
        %v2167 = vadd.f32 %v2163, %v559
        %v2168 = vld [vmem:[#allocation13] sm:$0xf]
        %v2169 = vld [vmem:[#allocation13 + $0x4] sm:$0xf]
        %v2170 = vld [vmem:[#allocation13 + $0x8] sm:$0xf]
        %v2171 = vld [vmem:[#allocation13 + $0xc] sm:$0xf]
        %v2172 = vpack.c.bf16 %v2165, %v2164
        %v2173 = vpack.c.bf16 %v2167, %v2166
        %v2174 = vld [vmem:[#allocation14] sm:$0xff]
        %v2175 = vld [vmem:[#allocation14 + $0x8] sm:$0xff]
        %v2176 = vld [vmem:[#allocation14 + $0x10] sm:$0xff]
        %v2177 = vld [vmem:[#allocation14 + $0x18] sm:$0xff]
        %2179 = vset.pattern.permute.xlu0 0
        %2180 = vperm.xlu0 %2179, %v2174
        %v2181 = vpop.permute.xlu0 %2180
        %2184 = vset.pattern.permute.xlu0 0
        %2185 = vperm.xlu0 %2184, %v2175
        %v2186 = vpop.permute.xlu0 %2185
        %2189 = vset.pattern.permute.xlu0 0
        %2190 = vperm.xlu0 %2189, %v2176
        %v2191 = vpop.permute.xlu0 %2190
        %2194 = vset.pattern.permute.xlu0 0
        %2195 = vperm.xlu0 %2194, %v2177
        %v2196 = vpop.permute.xlu0 %2195
        %v2202 = vunpack.c.l.b16 %v2168
        %v2203 = vunpack.c.l.b16 %v2169
        %v2204 = vunpack.c.l.b16 %v2170
        %v2205 = vunpack.c.l.b16 %v2171
        %v2206 = vpack.c.b16 %v2203, %v2202
        %v2207 = vpack.c.b16 %v2205, %v2204
        %v2209 = vsel %vm618, %v2206, 0
        %v2212 = vsel %vm618, %v2207, 0
        %2214 = vmatprep.subr.bf16.mxu0 0
        %2215 = vmatpush1.bf16.msra.mxu0 0
        %2216 = vmatprep.subr.bf16.mxu0 0
        %2217 = vmatpush1.bf16.msra.mxu0 0
        %2218 = vmatprep.subr.bf16.mxu0 0
        %2219 = vmatpush1.bf16.msra.mxu0 0
        %2220 = vmatprep.subr.bf16.mxu0 0
        %2221 = vmatpush1.bf16.msra.mxu0 0
        %2222 = vmatprep.subr.bf16.mxu0 0
        %2223 = vmatpush1.bf16.msra.mxu0 0
        %2224 = vmatprep.subr.bf16.mxu0 0
        %2225 = vmatpush1.bf16.msra.mxu0 0
        %2226 = vmatprep.subr.bf16.mxu0 0
        %2227 = vmatpush1.bf16.msra.mxu0 %v2173
        %2228 = vmatprep.subr.bf16.mxu0 0
        %2229 = vmatpush1.bf16.msra.mxu0 %v2172
        %2230 = vmatprep.subr.bf16.mxu0 0
        %2231 = vmatpush2.bf16.msra.mxu0 0
        %2232 = vmatprep.subr.bf16.mxu0 0
        %2233 = vmatpush2.bf16.msra.mxu0 0
        %2234 = vmatprep.subr.bf16.mxu0 0
        %2235 = vmatpush2.bf16.msra.mxu0 0
        %2236 = vmatprep.subr.bf16.mxu0 0
        %2237 = vmatpush2.bf16.msra.mxu0 0
        %2238 = vmatprep.subr.bf16.mxu0 0
        %2239 = vmatpush2.bf16.msra.mxu0 0
        %2240 = vmatprep.subr.bf16.mxu0 0
        %2241 = vmatpush2.bf16.msra.mxu0 0
        %2242 = vmatprep.subr.bf16.mxu0 0
        %2243 = vmatpush2.bf16.msra.mxu0 0
        %2244 = vmatprep.subr.bf16.mxu0 0
        %2245 = vmatpush2.bf16.msra.mxu0 0
        %2246 = vmatprep.mubr.bf16.mxu0 0
        %2247 = vmatmul.mubr.bf16.gmra.mxu0 %v2209
        %v2248 = vpop.f32.mrf.mxu0
        %v2249 = vadd.f32 %v2181, %v2248
        %v2250 = vpop.f32.mrf.mxu0
        %v2251 = vpop.f32.mrf.mxu0
        %v2252 = vadd.f32 %v2186, %v2251
        %v2253 = vpop.f32.mrf.mxu0
        %2254 = vmatprep.mubr.bf16.mxu0 0
        %2255 = vmatmul.mubr.bf16.gmra.mxu0 %v2212
        %v2256 = vpop.f32.mrf.mxu0
        %v2257 = vadd.f32 %v2191, %v2256
        %v2258 = vpop.f32.mrf.mxu0
        %v2259 = vpop.f32.mrf.mxu0
        %v2260 = vadd.f32 %v2196, %v2259
        %v2261 = vpop.f32.mrf.mxu0
        %2262 = vdwg.mxu0
        %v2263 = vmax.f32 %v2249, 0.0
        %v2264 = vmax.f32 %v2252, 0.0
        %v2265 = vmax.f32 %v2257, 0.0
        %v2266 = vmax.f32 %v2260, 0.0
        %v2267 = vld [vmem:[#allocation16] sm:$0xff]
        %v2268 = vld [vmem:[#allocation16 + $0x8] sm:$0xff]
        %v2269 = vld [vmem:[#allocation16 + $0x10] sm:$0xff]
        %v2270 = vld [vmem:[#allocation16 + $0x18] sm:$0xff]
        %2272 = vset.pattern.permute.xlu0 0
        %2273 = vperm.xlu0 %2272, %v2267
        %v2274 = vpop.permute.xlu0 %2273
        %2277 = vset.pattern.permute.xlu0 0
        %2278 = vperm.xlu0 %2277, %v2268
        %v2279 = vpop.permute.xlu0 %2278
        %2282 = vset.pattern.permute.xlu0 0
        %2283 = vperm.xlu0 %2282, %v2269
        %v2284 = vpop.permute.xlu0 %2283
        %2287 = vset.pattern.permute.xlu0 0
        %2288 = vperm.xlu0 %2287, %v2270
        %v2289 = vpop.permute.xlu0 %2288
        %v2291 = vmul.f32 %v2263, %v2274
        %v2292 = vmul.f32 %v2264, %v2279
        %v2293 = vmul.f32 %v2265, %v2284
        %v2294 = vmul.f32 %v2266, %v2289
        %2295 = vset.pattern.permute.xlu0 1
        %2296 = vperm.xlu0 %2295, %v2267
        %v2297 = vpop.permute.xlu0 %2296
        %2299 = vset.pattern.permute.xlu0 1
        %2300 = vperm.xlu0 %2299, %v2268
        %v2301 = vpop.permute.xlu0 %2300
        %2303 = vset.pattern.permute.xlu0 1
        %2304 = vperm.xlu0 %2303, %v2269
        %v2305 = vpop.permute.xlu0 %2304
        %2307 = vset.pattern.permute.xlu0 1
        %2308 = vperm.xlu0 %2307, %v2270
        %v2309 = vpop.permute.xlu0 %2308
        %v2311 = vadd.f32 %v2291, %v2297
        %v2312 = vadd.f32 %v2292, %v2301
        %v2313 = vadd.f32 %v2293, %v2305
        %v2314 = vadd.f32 %v2294, %v2309
        %v2315 = vld [vmem:[#allocation17] sm:$0xf]
        %v2316 = vld [vmem:[#allocation17 + $0x4] sm:$0xf]
        %v2317 = vpack.c.bf16 %v2312, %v2311
        %v2318 = vpack.c.bf16 %v2314, %v2313
        %v2319 = vld [vmem:[%s10] sm:$0xff]
        %v2320 = vld [vmem:[%s10 + $0x8] sm:$0xff]
        %2322 = vset.pattern.permute.xlu0 0
        %2323 = vperm.xlu0 %2322, %v2319
        %v2324 = vpop.permute.xlu0 %2323
        %2327 = vset.pattern.permute.xlu0 0
        %2328 = vperm.xlu0 %2327, %v2320
        %v2329 = vpop.permute.xlu0 %2328
        %v2333 = vunpack.c.l.b16 %v2315
        %v2334 = vunpack.c.l.b16 %v2316
        %v2335 = vpack.c.b16 %v2334, %v2333
        %v2337 = vsel %vm618, %v2335, 0
        %2339 = vmatprep.subr.bf16.mxu0 0
        %2340 = vmatpush1.bf16.msra.mxu0 0
        %2341 = vmatprep.subr.bf16.mxu0 0
        %2342 = vmatpush1.bf16.msra.mxu0 0
        %2343 = vmatprep.subr.bf16.mxu0 0
        %2344 = vmatpush1.bf16.msra.mxu0 0
        %2345 = vmatprep.subr.bf16.mxu0 0
        %2346 = vmatpush1.bf16.msra.mxu0 0
        %2347 = vmatprep.subr.bf16.mxu0 0
        %2348 = vmatpush1.bf16.msra.mxu0 0
        %2349 = vmatprep.subr.bf16.mxu0 0
        %2350 = vmatpush1.bf16.msra.mxu0 0
        %2351 = vmatprep.subr.bf16.mxu0 0
        %2352 = vmatpush1.bf16.msra.mxu0 %v2318
        %2353 = vmatprep.subr.bf16.mxu0 0
        %2354 = vmatpush1.bf16.msra.mxu0 %v2317
        %2355 = vmatprep.subr.bf16.mxu0 0
        %2356 = vmatpush2.bf16.msra.mxu0 0
        %2357 = vmatprep.subr.bf16.mxu0 0
        %2358 = vmatpush2.bf16.msra.mxu0 0
        %2359 = vmatprep.subr.bf16.mxu0 0
        %2360 = vmatpush2.bf16.msra.mxu0 0
        %2361 = vmatprep.subr.bf16.mxu0 0
        %2362 = vmatpush2.bf16.msra.mxu0 0
        %2363 = vmatprep.subr.bf16.mxu0 0
        %2364 = vmatpush2.bf16.msra.mxu0 0
        %2365 = vmatprep.subr.bf16.mxu0 0
        %2366 = vmatpush2.bf16.msra.mxu0 0
        %2367 = vmatprep.subr.bf16.mxu0 0
        %2368 = vmatpush2.bf16.msra.mxu0 0
        %2369 = vmatprep.subr.bf16.mxu0 0
        %2370 = vmatpush2.bf16.msra.mxu0 0
        %2371 = vmatprep.mubr.bf16.mxu0 0
        %2372 = vmatmul.mubr.bf16.gmra.mxu0 %v2337
        %v2373 = vpop.f32.mrf.mxu0
        %v2374 = vadd.f32 %v2324, %v2373
        %v2375 = vpop.f32.mrf.mxu0
        %v2376 = vpop.f32.mrf.mxu0
        %v2377 = vadd.f32 %v2329, %v2376
        %v2378 = vpop.f32.mrf.mxu0
        %2379 = vdwg.mxu0
        %v2380 = vmul.f32 %v2374, %v682
        %v2381 = vmul.f32 %v2377, %v682
        %2382 = vst.msk [vmem:[%s554] sm:$0xff] %vm618, %v2380
        %2383 = vst.msk [vmem:[%s554 + $0x8] sm:$0xff] %vm618, %v2381
        %s2384 = sand.u32 %s284, 1
        %s2385 = scalar_lea.sflag [#allocation4], %s2384
        %s2386 = sand.u32 %s284, 1
        %s2387 = smul.addr %s2386, 16
        %s2388 = scalar_lea.vmem [#allocation19], %s2387
        // Predicated region
        $region112: #{_lambda_.1} parent=63 // pred_check
          %p2389 = pneg %p294
        $region113: #{_lambda_.1} parent=63 // pred_check_branch
          %2391 = sbr.rel (%p2389) target = $region115
        $region114: #{_lambda_.1} parent=63 // pred_region
          %s2393 = ssub.s32 256, 256
          %2394 = vsyncadd %s2385, %s2393
          %s2395 = smul.addr %s35, 2
          %s2396 = smul.addr %s2395, 128
          %s2397 = scalar_lea.hbm %s11, %s2396
          %s2398 = sshll.u32 %s2388, 4
          %s2399 = int_to_ptr.vmem [resolvable:$true] %s2398
          %2404 = dma.vmem_to_hbm [thread:$0]  %s2399, 256, %s2397, %s2385, 128, 128, 8
        $region115: #{_lambda_.1} parent=63 // pred_fallthru
          _
      $region64: #{_lambda_.1} parent=5 // pred_fallthru
        _
      %p2405 = scmp.le.s32.totalorder 2, %s30
      // Predicated region
      $region116: #{_lambda_.1} parent=5 // pred_check
        %p2406 = pneg %p2405
      $region117: #{_lambda_.1} parent=5 // pred_check_branch
        %2408 = sbr.rel (%p2406) target = $region119
      $region118: #{_lambda_.1} parent=5 // pred_region
        %s2409 = ssub.s32 %s30, 2
        // Predicated region
        $region120: #{_lambda_.1} parent=118 // pred_check
          %p2410 = pneg %p300
        $region121: #{_lambda_.1} parent=118 // pred_check_branch
          %2412 = sbr.rel (%p2410) target = $region123
        $region122: #{_lambda_.1} parent=118 // pred_region
          %s2413 = sand.u32 %s285, 1
          %s2414 = scalar_lea.sflag [#allocation4], %s2413
          %s2415 = sand.u32 %s285, 1
          %s2416 = smul.addr %s2415, 16
          %s2417 = scalar_lea.vmem [#allocation19], %s2416
          %2418 = dma.done %s2414, 256
        $region123: #{_lambda_.1} parent=118 // pred_fallthru
          _
      $region119: #{_lambda_.1} parent=5 // pred_fallthru
        _
    $region6: #{_lambda_.1} parent=1 // loop_footer
      %s34 = sadd.s32 1, %s30
    $region7: #{_lambda_.1} parent=1 // loop_footer_branch
      %29 = sbr.rel target = $region3
    $region8: #{_lambda_.1} parent=1 // loop_exit
      _
    %2419 = vsyncpa [#allocation3], 1
    %s2420 = scalar_lea.sflag [#allocation3], 1
    %2421 = vsyncpa %s2420, 1
    %2422 = vsyncpa [#allocation6], 1
    %s2423 = scalar_lea.sflag [#allocation6], 1
    %2424 = vsyncpa %s2423, 1
    %2425 = vsyncpa [#allocation9], 1
    %2426 = vsyncpa [#allocation12], 1
    %2427 = vsyncpa [#allocation15], 1
    %2428 = vsyncpa [#allocation18], 1
    %2429 = vsyncpa [#allocation4], 1
    %s2430 = scalar_lea.sflag [#allocation4], 1
    %2431 = vsyncpa %s2430, 1

</llo_original>
